<compile_context>
chip_gen: v6e
topology: v6e:2x2x1
jax: 0.10.0
libtpu: 0.0.40
codegen_flags: <defaults>
</compile_context>

<pallas_src>
import jax
import jax.numpy as jnp
from jax import lax
from jax.experimental import pallas as pl
from jax.experimental.pallas import tpu as pltpu


def _round_up(n, m):
    return ((n + m - 1) // m) * m


def _make_lstm_kernel(seq_len, time_chunk, hp, mm_dtype):
    """Builds the recurrent kernel for static (T, Tc, Hp, matmul dtype)."""
    ragged = (seq_len % time_chunk) != 0

    def kernel(gx_ref, u_hbm_ref, hseq_ref, cfin_ref, hfin_ref,
               u_vmem, h_scratch, dma_sem):
        chunk = pl.program_id(0)

        @pl.when(chunk == 0)
        def _():
            # One-time: zero the carried hidden state and pull U (already in
            # the matmul dtype) into its single-buffered VMEM residency.
            h_scratch[...] = jnp.zeros_like(h_scratch)
            cp = pltpu.make_async_copy(u_hbm_ref, u_vmem, dma_sem)
            cp.start()
            cp.wait()

        # Per-gate weight tiles, hoisted out of the time loop.
        u_i = u_vmem[0]
        u_g = u_vmem[1]
        u_o = u_vmem[2]

        def step(t, carry):
            h_prev, _ = carry
            h_mm = h_prev.astype(mm_dtype)      # bf16 LHS for the MXU
            gx = gx_ref[t]                      # (Bp, 3*Hp), f32
            # Three (Bp, Hp) gate tiles; Hp is a multiple of 128 so every
            # slice is lane-aligned.  Each activation is consumed right away
            # (small vreg working set, EUP overlaps next gate's MXU matmul).
            i_t = jax.nn.sigmoid(
                gx[:, :hp]
                + jnp.dot(h_mm, u_i, preferred_element_type=jnp.float32))
            g_t = jnp.tanh(
                gx[:, hp:2 * hp]
                + jnp.dot(h_mm, u_g, preferred_element_type=jnp.float32))
            o_t = jax.nn.sigmoid(
                gx[:, 2 * hp:]
                + jnp.dot(h_mm, u_o, preferred_element_type=jnp.float32))
            c_t = i_t * g_t                     # no forget gate
            h_t = o_t * jnp.tanh(c_t)

            hseq_ref[t] = h_t                   # lane-dense (Bp, Hp) store

            if ragged:
                # Only emitted when the last chunk has padded tail steps:
                # write the finals exactly at the last *real* timestep.
                @pl.when(chunk * time_chunk + t == seq_len - 1)
                def _():
                    cfin_ref[...] = c_t
                    hfin_ref[...] = h_t

            return (h_t, c_t)

        h0 = h_scratch[...]
        h_last, c_last = lax.fori_loop(0, time_chunk, step,
                                       (h0, jnp.zeros_like(h0)), unroll=True)
        h_scratch[...] = h_last                 # carry hidden to next chunk

        if not ragged:
            # Finals hoisted out of the hot loop: written once, after the
            # last step of the last chunk.
            @pl.when(chunk == pl.num_programs(0) - 1)
            def _():
                cfin_ref[...] = c_last
                hfin_ref[...] = h_last

    return kernel


def lstm_noforget_forward(x, W, U, bias, wo, *, time_chunk=32,
                          matmul_dtype=jnp.bfloat16):
    """x: (batch, seq, input). Returns (out_seq, hidden_seq, (h_T, c_T, 0))."""
    B, T, I = x.shape
    H = U.shape[0]

    Bp = _round_up(B, 8)        # f32 sublane multiple
    Hp = _round_up(H, 128)      # lane multiple (256 on v6e/v7x if VMEM allows)
    Tc = max(1, min(time_chunk, T))
    n_chunks = pl.cdiv(T, Tc)
    T_pad = n_chunks * Tc

    f32 = jnp.float32
    x, W, U, bias, wo = (a.astype(f32) for a in (x, W, U, bias, wo))

    # Pad each of the three gate blocks of W / U / bias to Hp lanes.
    Wp = jnp.pad(W.reshape(I, 3, H),
                 ((0, 0), (0, 0), (0, Hp - H))).reshape(I, 3 * Hp)
    bp = jnp.pad(bias.reshape(3, H), ((0, 0), (0, Hp - H))).reshape(3 * Hp)
    # U as (3, Hp, Hp): one leading-index tile per gate, in the MXU dtype.
    U3 = jnp.transpose(
        jnp.pad(U.reshape(H, 3, H), ((0, Hp - H), (0, 0), (0, Hp - H))),
        (1, 0, 2)).astype(matmul_dtype)

    # Time-parallel input projection as one big MXU matmul outside the
    # kernel, emitted directly in (T_pad, Bp, 3Hp) layout. Batch/time padding
    # is folded into x (small) so there is no extra full-size pad of gates_x.
    xp = jnp.pad(x, ((0, Bp - B), (0, T_pad - T), (0, 0)))
    gates_x = jnp.einsum('bti,ik->tbk', xp, Wp) + bp

    kernel = _make_lstm_kernel(T, Tc, Hp, matmul_dtype)

    grid_spec = pltpu.PrefetchScalarGridSpec(
        num_scalar_prefetch=0,
        grid=(n_chunks,),
        in_specs=[
            pl.BlockSpec((Tc, Bp, 3 * Hp), lambda c: (c, 0, 0)),   # gates_x
            pl.BlockSpec(memory_space=pl.ANY),                     # U (raw HBM)
        ],
        out_specs=[
            pl.BlockSpec((Tc, Bp, Hp), lambda c: (c, 0, 0)),       # hidden slab
            pl.BlockSpec((Bp, Hp), lambda c: (0, 0)),              # final c_T
            pl.BlockSpec((Bp, Hp), lambda c: (0, 0)),              # final h_T
        ],
        scratch_shapes=[
            pltpu.VMEM((3, Hp, Hp), matmul_dtype),   # resident U (single copy)
            pltpu.VMEM((Bp, Hp), f32),               # carried hidden state
            pltpu.SemaphoreType.DMA,                 # U load semaphore
        ],
    )

    # Explicit VMEM budget: resident U + double-buffered gates_x / hseq
    # chunks + finals + scratch, with ~25% headroom.
    mm_bytes = jnp.dtype(matmul_dtype).itemsize
    vmem_needed = (
        3 * Hp * Hp * mm_bytes          # resident U scratch (single-buffered)
        + 2 * Tc * Bp * 3 * Hp * 4      # gates_x chunk (double-buffered)
        + 2 * Tc * Bp * Hp * 4          # hseq chunk (double-buffered)
        + 2 * 2 * Bp * Hp * 4           # cfin + hfin blocks
        + Bp * Hp * 4                   # carried h scratch
    )
    vmem_limit = int(min(128 * 1024 * 1024,
                         max(32 * 1024 * 1024,
                             int(vmem_needed * 1.25) + (2 << 20))))

    cost = pl.CostEstimate(
        flops=int(2 * T_pad * Bp * Hp * 3 * Hp + 10 * T_pad * Bp * Hp),
        transcendentals=int(4 * T_pad * Bp * Hp),
        bytes_accessed=int(4 * (T_pad * Bp * 3 * Hp + T_pad * Bp * Hp
                                + 2 * Bp * Hp) + 3 * Hp * Hp * mm_bytes),
    )

    hseq, cfin, hfin = pl.pallas_call(
        kernel,
        out_shape=(
            jax.ShapeDtypeStruct((T_pad, Bp, Hp), f32),
            jax.ShapeDtypeStruct((Bp, Hp), f32),
            jax.ShapeDtypeStruct((Bp, Hp), f32),
        ),
        grid_spec=grid_spec,
        compiler_params=pltpu.CompilerParams(
            dimension_semantics=("arbitrary",),   # time recurrence is sequential
            vmem_limit_bytes=vmem_limit,
        ),
        cost_estimate=cost,
    )(gates_x, U3)

    hidden_seq = jnp.transpose(hseq[:T, :B, :H], (1, 0, 2))       # (B, T, H)
    # Time-parallel readout as one big matmul (readout_nonlinearity == 'id').
    out_seq = jnp.einsum('bth,ho->bto', hidden_seq, wo)
    return out_seq, hidden_seq, (hfin[:B, :H], cfin[:B, :H], 0)


def _reference_forward(x, W, U, bias, wo):
    """Pure-JAX reference mirroring the PyTorch loop (for correctness check)."""
    B, T, I = x.shape
    H = U.shape[0]
    h = jnp.zeros((B, H), jnp.float32)
    c = jnp.zeros((B, H), jnp.float32)
    hs = []
    for t in range(T):
        gates = x[:, t, :] @ W + h @ U + bias
        i_t = jax.nn.sigmoid(gates[:, :H])
        g_t = jnp.tanh(gates[:, H:2 * H])
        o_t = jax.nn.sigmoid(gates[:, 2 * H:])
        c = i_t * g_t
        h = o_t * jnp.tanh(c)
        hs.append(h)
    hidden_seq = jnp.stack(hs, axis=1)               # (B, T, H)
    out_seq = hidden_seq @ wo                        # 'id' readout
    return out_seq, hidden_seq, (h, c, 0)


if __name__ == "__main__":
    # dims = (input_size, hidden_size, output_size)
    B, T, I, H, O = 2, 8, 4, 32, 8
    k = (1.0 / H) ** 0.5

    key = jax.random.PRNGKey(0)
    kx, kw, ku, kb, kwo = jax.random.split(key, 5)

    x = jax.random.normal(kx, (B, T, I), dtype=jnp.float32)
    W = jax.random.uniform(kw, (I, 3 * H), jnp.float32, -k, k)
    U = jax.random.uniform(ku, (H, 3 * H), jnp.float32, -k, k)
    bias = jax.random.uniform(kb, (3 * H,), jnp.float32, -k, k)
    wo = jax.random.uniform(kwo, (H, O), jnp.float32, -k, k)

    ro, rh, (rht, rct, _) = _reference_forward(x, W, U, bias, wo)

    def check(result, tol):
        out_seq, hidden_seq, (h_T, c_T, _) = jax.block_until_ready(result)
        assert jnp.allclose(out_seq, ro, atol=tol)
        assert jnp.allclose(hidden_seq, rh, atol=tol)
        assert jnp.allclose(h_T, rht, atol=tol)
        assert jnp.allclose(c_T, rct, atol=tol)

    # f32 recurrent matmul: tight tolerance; exercise single-chunk, even
    # multi-chunk, and uneven (ragged-T) chunking.
    for tc in (32, 4, 3):
        check(lstm_noforget_forward(x, W, U, bias, wo, time_chunk=tc,
                                    matmul_dtype=jnp.float32), 3e-5)

    # Default bf16 U / LHS (f32 accumulation + elementwise): slightly wider
    # tolerance, as noted in the review.
    for tc in (32, 3):
        check(lstm_noforget_forward(x, W, U, bias, wo, time_chunk=tc), 5e-3)

    print("KERNEL_OK")
</pallas_src>

<mosaic_0001>
module attributes {stable_mosaic.version = 11 : i64} {
  func.func @kernel(%arg0: i32, %arg1: memref<8x8x384xf32, #tpu.memory_space<vmem>>, %arg2: memref<3x128x128xf32, #tpu.memory_space<any>>, %arg3: memref<8x8x128xf32, #tpu.memory_space<vmem>>, %arg4: memref<8x128xf32, #tpu.memory_space<vmem>>, %arg5: memref<8x128xf32, #tpu.memory_space<vmem>>, %arg6: memref<3x128x128xf32, #tpu.memory_space<vmem>>, %arg7: memref<8x128xf32, #tpu.memory_space<vmem>>, %arg8: memref<!tpu.dma_semaphore, #tpu.memory_space<semaphore_mem>>) attributes {dimension_semantics = [#tpu.dimension_semantics<arbitrary>], iteration_bounds = array<i64: 1>, scalar_prefetch = 0 : i64, scratch_operands = 3 : i64, tpu.core_type = #tpu.core_type<tc>, window_params = [{transform_indices = @transform_0, window_bounds = array<i64: 8, 8, 384>}, {}, {transform_indices = @transform_2, window_bounds = array<i64: 8, 8, 128>}, {pipeline_mode = #tpu.pipeline_mode<synchronous>, transform_indices = @transform_3, window_bounds = array<i64: 8, 128>}, {pipeline_mode = #tpu.pipeline_mode<synchronous>, transform_indices = @transform_4, window_bounds = array<i64: 8, 128>}]} {
    %c0_i32 = arith.constant 0 : i32
    %0 = arith.cmpi eq, %arg0, %c0_i32 : i32
    %1 = arith.extui %0 : i1 to i32
    %c0_i32_0 = arith.constant 0 : i32
    %2 = arith.cmpi ne, %1, %c0_i32_0 : i32
    scf.if %2 {
      %cst_86 = arith.constant 0.000000e+00 : f32
      %255 = vector.broadcast %cst_86 : f32 to vector<8x128xf32>
      %c0_87 = arith.constant 0 : index
      %c0_88 = arith.constant 0 : index
      %256 = vector.load %arg7[%c0_87, %c0_88] : memref<8x128xf32, #tpu.memory_space<vmem>>, vector<8x128xf32>
      tpu.vector_store %arg7[%c0_87, %c0_88], %255 {strides = array<i32>} : memref<8x128xf32, #tpu.memory_space<vmem>>, vector<8x128xf32>,
      tpu.enqueue_dma source(%arg2 : memref<3x128x128xf32, #tpu.memory_space<any>>) target(%arg6 : memref<3x128x128xf32, #tpu.memory_space<vmem>>) target_semaphore(%arg8 : memref<!tpu.dma_semaphore, #tpu.memory_space<semaphore_mem>>)
      tpu.wait_dma2 semaphore(%arg8 : memref<!tpu.dma_semaphore, #tpu.memory_space<semaphore_mem>>) src(%arg2 : memref<3x128x128xf32, #tpu.memory_space<any>>) dst(%arg6 : memref<3x128x128xf32, #tpu.memory_space<vmem>>)
    } else {
    }
    %c0 = arith.constant 0 : index
    %c0_1 = arith.constant 0 : index
    %c0_2 = arith.constant 0 : index
    %3 = vector.load %arg6[%c0, %c0_1, %c0_2] : memref<3x128x128xf32, #tpu.memory_space<vmem>>, vector<1x128x128xf32>
    %4 = vector.shape_cast %3 : vector<1x128x128xf32> to vector<128x128xf32>
    %c1 = arith.constant 1 : index
    %c0_3 = arith.constant 0 : index
    %c0_4 = arith.constant 0 : index
    %5 = vector.load %arg6[%c1, %c0_3, %c0_4] : memref<3x128x128xf32, #tpu.memory_space<vmem>>, vector<1x128x128xf32>
    %6 = vector.shape_cast %5 : vector<1x128x128xf32> to vector<128x128xf32>
    %c2 = arith.constant 2 : index
    %c0_5 = arith.constant 0 : index
    %c0_6 = arith.constant 0 : index
    %7 = vector.load %arg6[%c2, %c0_5, %c0_6] : memref<3x128x128xf32, #tpu.memory_space<vmem>>, vector<1x128x128xf32>
    %8 = vector.shape_cast %7 : vector<1x128x128xf32> to vector<128x128xf32>
    %c0_7 = arith.constant 0 : index
    %c0_8 = arith.constant 0 : index
    %9 = vector.load %arg7[%c0_7, %c0_8] : memref<8x128xf32, #tpu.memory_space<vmem>>, vector<8x128xf32>
    %cst = arith.constant 0.000000e+00 : f32
    %10 = vector.broadcast %cst : f32 to vector<8x128xf32>
    %c0_i32_9 = arith.constant 0 : i32
    %11 = arith.index_cast %c0_i32_9 : i32 to index
    %c0_10 = arith.constant 0 : index
    %c0_11 = arith.constant 0 : index
    %12 = vector.load %arg1[%11, %c0_10, %c0_11] : memref<8x8x384xf32, #tpu.memory_space<vmem>>, vector<1x8x384xf32>
    %13 = vector.shape_cast %12 : vector<1x8x384xf32> to vector<8x384xf32>
    %14 = vector.extract_strided_slice %13 {offsets = [0, 0], sizes = [8, 128], strides = [1, 1]} : vector<8x384xf32> to vector<8x128xf32>
    %cst_12 = arith.constant dense<0.000000e+00> : vector<8x128xf32>
    %15 = tpu.matmul %9, %4, %cst_12 {dimension_numbers = #tpu.dot_dimension_numbers<[1], [0], [0], [1], [0, 0, 1, 1], [], []>} : vector<8x128xf32>, vector<128x128xf32>, vector<8x128xf32> -> vector<8x128xf32>
    %16 = arith.addf %14, %15 : vector<8x128xf32>
    %17 = arith.negf %16 : vector<8x128xf32>
    %18 = math.exp %17 : vector<8x128xf32>
    %cst_13 = arith.constant 1.000000e+00 : f32
    %19 = vector.broadcast %cst_13 : f32 to vector<8x128xf32>
    %20 = arith.addf %19, %18 : vector<8x128xf32>
    %21 = arith.divf %19, %20 : vector<8x128xf32>
    %22 = vector.extract_strided_slice %13 {offsets = [0, 128], sizes = [8, 128], strides = [1, 1]} : vector<8x384xf32> to vector<8x128xf32>
    %cst_14 = arith.constant dense<0.000000e+00> : vector<8x128xf32>
    %23 = tpu.matmul %9, %6, %cst_14 {dimension_numbers = #tpu.dot_dimension_numbers<[1], [0], [0], [1], [0, 0, 1, 1], [], []>} : vector<8x128xf32>, vector<128x128xf32>, vector<8x128xf32> -> vector<8x128xf32>
    %24 = arith.addf %22, %23 : vector<8x128xf32>
    %25 = math.tanh %24 : vector<8x128xf32>
    %26 = vector.extract_strided_slice %13 {offsets = [0, 256], sizes = [8, 128], strides = [1, 1]} : vector<8x384xf32> to vector<8x128xf32>
    %cst_15 = arith.constant dense<0.000000e+00> : vector<8x128xf32>
    %27 = tpu.matmul %9, %8, %cst_15 {dimension_numbers = #tpu.dot_dimension_numbers<[1], [0], [0], [1], [0, 0, 1, 1], [], []>} : vector<8x128xf32>, vector<128x128xf32>, vector<8x128xf32> -> vector<8x128xf32>
    %28 = arith.addf %26, %27 : vector<8x128xf32>
    %29 = arith.negf %28 : vector<8x128xf32>
    %30 = math.exp %29 : vector<8x128xf32>
    %cst_16 = arith.constant 1.000000e+00 : f32
    %31 = vector.broadcast %cst_16 : f32 to vector<8x128xf32>
    %32 = arith.addf %31, %30 : vector<8x128xf32>
    %33 = arith.divf %31, %32 : vector<8x128xf32>
    %34 = arith.mulf %21, %25 : vector<8x128xf32>
    %35 = math.tanh %34 : vector<8x128xf32>
    %36 = arith.mulf %33, %35 : vector<8x128xf32>
    %37 = arith.index_cast %c0_i32_9 : i32 to index
    %c0_17 = arith.constant 0 : index
    %c0_18 = arith.constant 0 : index
    %38 = vector.load %arg3[%37, %c0_17, %c0_18] : memref<8x8x128xf32, #tpu.memory_space<vmem>>, vector<1x8x128xf32>
    %39 = vector.shape_cast %38 : vector<1x8x128xf32> to vector<8x128xf32>
    %40 = vector.shape_cast %36 : vector<8x128xf32> to vector<1x8x128xf32>
    tpu.vector_store %arg3[%37, %c0_17, %c0_18], %40 {strides = array<i32>} : memref<8x8x128xf32, #tpu.memory_space<vmem>>, vector<1x8x128xf32>,
    %c1_i32 = arith.constant 1 : i32
    %41 = arith.index_cast %c1_i32 : i32 to index
    %c0_19 = arith.constant 0 : index
    %c0_20 = arith.constant 0 : index
    %42 = vector.load %arg1[%41, %c0_19, %c0_20] : memref<8x8x384xf32, #tpu.memory_space<vmem>>, vector<1x8x384xf32>
    %43 = vector.shape_cast %42 : vector<1x8x384xf32> to vector<8x384xf32>
    %44 = vector.extract_strided_slice %43 {offsets = [0, 0], sizes = [8, 128], strides = [1, 1]} : vector<8x384xf32> to vector<8x128xf32>
    %cst_21 = arith.constant dense<0.000000e+00> : vector<8x128xf32>
    %45 = tpu.matmul %36, %4, %cst_21 {dimension_numbers = #tpu.dot_dimension_numbers<[1], [0], [0], [1], [0, 0, 1, 1], [], []>} : vector<8x128xf32>, vector<128x128xf32>, vector<8x128xf32> -> vector<8x128xf32>
    %46 = arith.addf %44, %45 : vector<8x128xf32>
    %47 = arith.negf %46 : vector<8x128xf32>
    %48 = math.exp %47 : vector<8x128xf32>
    %cst_22 = arith.constant 1.000000e+00 : f32
    %49 = vector.broadcast %cst_22 : f32 to vector<8x128xf32>
    %50 = arith.addf %49, %48 : vector<8x128xf32>
    %51 = arith.divf %49, %50 : vector<8x128xf32>
    %52 = vector.extract_strided_slice %43 {offsets = [0, 128], sizes = [8, 128], strides = [1, 1]} : vector<8x384xf32> to vector<8x128xf32>
    %cst_23 = arith.constant dense<0.000000e+00> : vector<8x128xf32>
    %53 = tpu.matmul %36, %6, %cst_23 {dimension_numbers = #tpu.dot_dimension_numbers<[1], [0], [0], [1], [0, 0, 1, 1], [], []>} : vector<8x128xf32>, vector<128x128xf32>, vector<8x128xf32> -> vector<8x128xf32>
    %54 = arith.addf %52, %53 : vector<8x128xf32>
    %55 = math.tanh %54 : vector<8x128xf32>
    %56 = vector.extract_strided_slice %43 {offsets = [0, 256], sizes = [8, 128], strides = [1, 1]} : vector<8x384xf32> to vector<8x128xf32>
    %cst_24 = arith.constant dense<0.000000e+00> : vector<8x128xf32>
    %57 = tpu.matmul %36, %8, %cst_24 {dimension_numbers = #tpu.dot_dimension_numbers<[1], [0], [0], [1], [0, 0, 1, 1], [], []>} : vector<8x128xf32>, vector<128x128xf32>, vector<8x128xf32> -> vector<8x128xf32>
    %58 = arith.addf %56, %57 : vector<8x128xf32>
    %59 = arith.negf %58 : vector<8x128xf32>
    %60 = math.exp %59 : vector<8x128xf32>
    %cst_25 = arith.constant 1.000000e+00 : f32
    %61 = vector.broadcast %cst_25 : f32 to vector<8x128xf32>
    %62 = arith.addf %61, %60 : vector<8x128xf32>
    %63 = arith.divf %61, %62 : vector<8x128xf32>
    %64 = arith.mulf %51, %55 : vector<8x128xf32>
    %65 = math.tanh %64 : vector<8x128xf32>
    %66 = arith.mulf %63, %65 : vector<8x128xf32>
    %67 = arith.index_cast %c1_i32 : i32 to index
    %c0_26 = arith.constant 0 : index
    %c0_27 = arith.constant 0 : index
    %68 = vector.load %arg3[%67, %c0_26, %c0_27] : memref<8x8x128xf32, #tpu.memory_space<vmem>>, vector<1x8x128xf32>
    %69 = vector.shape_cast %68 : vector<1x8x128xf32> to vector<8x128xf32>
    %70 = vector.shape_cast %66 : vector<8x128xf32> to vector<1x8x128xf32>
    tpu.vector_store %arg3[%67, %c0_26, %c0_27], %70 {strides = array<i32>} : memref<8x8x128xf32, #tpu.memory_space<vmem>>, vector<1x8x128xf32>,
    %c2_i32 = arith.constant 2 : i32
    %71 = arith.index_cast %c2_i32 : i32 to index
    %c0_28 = arith.constant 0 : index
    %c0_29 = arith.constant 0 : index
    %72 = vector.load %arg1[%71, %c0_28, %c0_29] : memref<8x8x384xf32, #tpu.memory_space<vmem>>, vector<1x8x384xf32>
    %73 = vector.shape_cast %72 : vector<1x8x384xf32> to vector<8x384xf32>
    %74 = vector.extract_strided_slice %73 {offsets = [0, 0], sizes = [8, 128], strides = [1, 1]} : vector<8x384xf32> to vector<8x128xf32>
    %cst_30 = arith.constant dense<0.000000e+00> : vector<8x128xf32>
    %75 = tpu.matmul %66, %4, %cst_30 {dimension_numbers = #tpu.dot_dimension_numbers<[1], [0], [0], [1], [0, 0, 1, 1], [], []>} : vector<8x128xf32>, vector<128x128xf32>, vector<8x128xf32> -> vector<8x128xf32>
    %76 = arith.addf %74, %75 : vector<8x128xf32>
    %77 = arith.negf %76 : vector<8x128xf32>
    %78 = math.exp %77 : vector<8x128xf32>
    %cst_31 = arith.constant 1.000000e+00 : f32
    %79 = vector.broadcast %cst_31 : f32 to vector<8x128xf32>
    %80 = arith.addf %79, %78 : vector<8x128xf32>
    %81 = arith.divf %79, %80 : vector<8x128xf32>
    %82 = vector.extract_strided_slice %73 {offsets = [0, 128], sizes = [8, 128], strides = [1, 1]} : vector<8x384xf32> to vector<8x128xf32>
    %cst_32 = arith.constant dense<0.000000e+00> : vector<8x128xf32>
    %83 = tpu.matmul %66, %6, %cst_32 {dimension_numbers = #tpu.dot_dimension_numbers<[1], [0], [0], [1], [0, 0, 1, 1], [], []>} : vector<8x128xf32>, vector<128x128xf32>, vector<8x128xf32> -> vector<8x128xf32>
    %84 = arith.addf %82, %83 : vector<8x128xf32>
    %85 = math.tanh %84 : vector<8x128xf32>
    %86 = vector.extract_strided_slice %73 {offsets = [0, 256], sizes = [8, 128], strides = [1, 1]} : vector<8x384xf32> to vector<8x128xf32>
    %cst_33 = arith.constant dense<0.000000e+00> : vector<8x128xf32>
    %87 = tpu.matmul %66, %8, %cst_33 {dimension_numbers = #tpu.dot_dimension_numbers<[1], [0], [0], [1], [0, 0, 1, 1], [], []>} : vector<8x128xf32>, vector<128x128xf32>, vector<8x128xf32> -> vector<8x128xf32>
    %88 = arith.addf %86, %87 : vector<8x128xf32>
    %89 = arith.negf %88 : vector<8x128xf32>
    %90 = math.exp %89 : vector<8x128xf32>
    %cst_34 = arith.constant 1.000000e+00 : f32
    %91 = vector.broadcast %cst_34 : f32 to vector<8x128xf32>
    %92 = arith.addf %91, %90 : vector<8x128xf32>
    %93 = arith.divf %91, %92 : vector<8x128xf32>
    %94 = arith.mulf %81, %85 : vector<8x128xf32>
    %95 = math.tanh %94 : vector<8x128xf32>
    %96 = arith.mulf %93, %95 : vector<8x128xf32>
    %97 = arith.index_cast %c2_i32 : i32 to index
    %c0_35 = arith.constant 0 : index
    %c0_36 = arith.constant 0 : index
    %98 = vector.load %arg3[%97, %c0_35, %c0_36] : memref<8x8x128xf32, #tpu.memory_space<vmem>>, vector<1x8x128xf32>
    %99 = vector.shape_cast %98 : vector<1x8x128xf32> to vector<8x128xf32>
    %100 = vector.shape_cast %96 : vector<8x128xf32> to vector<1x8x128xf32>
    tpu.vector_store %arg3[%97, %c0_35, %c0_36], %100 {strides = array<i32>} : memref<8x8x128xf32, #tpu.memory_space<vmem>>, vector<1x8x128xf32>,
    %c3_i32 = arith.constant 3 : i32
    %101 = arith.index_cast %c3_i32 : i32 to index
    %c0_37 = arith.constant 0 : index
    %c0_38 = arith.constant 0 : index
    %102 = vector.load %arg1[%101, %c0_37, %c0_38] : memref<8x8x384xf32, #tpu.memory_space<vmem>>, vector<1x8x384xf32>
    %103 = vector.shape_cast %102 : vector<1x8x384xf32> to vector<8x384xf32>
    %104 = vector.extract_strided_slice %103 {offsets = [0, 0], sizes = [8, 128], strides = [1, 1]} : vector<8x384xf32> to vector<8x128xf32>
    %cst_39 = arith.constant dense<0.000000e+00> : vector<8x128xf32>
    %105 = tpu.matmul %96, %4, %cst_39 {dimension_numbers = #tpu.dot_dimension_numbers<[1], [0], [0], [1], [0, 0, 1, 1], [], []>} : vector<8x128xf32>, vector<128x128xf32>, vector<8x128xf32> -> vector<8x128xf32>
    %106 = arith.addf %104, %105 : vector<8x128xf32>
    %107 = arith.negf %106 : vector<8x128xf32>
    %108 = math.exp %107 : vector<8x128xf32>
    %cst_40 = arith.constant 1.000000e+00 : f32
    %109 = vector.broadcast %cst_40 : f32 to vector<8x128xf32>
    %110 = arith.addf %109, %108 : vector<8x128xf32>
    %111 = arith.divf %109, %110 : vector<8x128xf32>
    %112 = vector.extract_strided_slice %103 {offsets = [0, 128], sizes = [8, 128], strides = [1, 1]} : vector<8x384xf32> to vector<8x128xf32>
    %cst_41 = arith.constant dense<0.000000e+00> : vector<8x128xf32>
    %113 = tpu.matmul %96, %6, %cst_41 {dimension_numbers = #tpu.dot_dimension_numbers<[1], [0], [0], [1], [0, 0, 1, 1], [], []>} : vector<8x128xf32>, vector<128x128xf32>, vector<8x128xf32> -> vector<8x128xf32>
    %114 = arith.addf %112, %113 : vector<8x128xf32>
    %115 = math.tanh %114 : vector<8x128xf32>
    %116 = vector.extract_strided_slice %103 {offsets = [0, 256], sizes = [8, 128], strides = [1, 1]} : vector<8x384xf32> to vector<8x128xf32>
    %cst_42 = arith.constant dense<0.000000e+00> : vector<8x128xf32>
    %117 = tpu.matmul %96, %8, %cst_42 {dimension_numbers = #tpu.dot_dimension_numbers<[1], [0], [0], [1], [0, 0, 1, 1], [], []>} : vector<8x128xf32>, vector<128x128xf32>, vector<8x128xf32> -> vector<8x128xf32>
    %118 = arith.addf %116, %117 : vector<8x128xf32>
    %119 = arith.negf %118 : vector<8x128xf32>
    %120 = math.exp %119 : vector<8x128xf32>
    %cst_43 = arith.constant 1.000000e+00 : f32
    %121 = vector.broadcast %cst_43 : f32 to vector<8x128xf32>
    %122 = arith.addf %121, %120 : vector<8x128xf32>
    %123 = arith.divf %121, %122 : vector<8x128xf32>
    %124 = arith.mulf %111, %115 : vector<8x128xf32>
    %125 = math.tanh %124 : vector<8x128xf32>
    %126 = arith.mulf %123, %125 : vector<8x128xf32>
    %127 = arith.index_cast %c3_i32 : i32 to index
    %c0_44 = arith.constant 0 : index
    %c0_45 = arith.constant 0 : index
    %128 = vector.load %arg3[%127, %c0_44, %c0_45] : memref<8x8x128xf32, #tpu.memory_space<vmem>>, vector<1x8x128xf32>
    %129 = vector.shape_cast %128 : vector<1x8x128xf32> to vector<8x128xf32>
    %130 = vector.shape_cast %126 : vector<8x128xf32> to vector<1x8x128xf32>
    tpu.vector_store %arg3[%127, %c0_44, %c0_45], %130 {strides = array<i32>} : memref<8x8x128xf32, #tpu.memory_space<vmem>>, vector<1x8x128xf32>,
    %c4_i32 = arith.constant 4 : i32
    %131 = arith.index_cast %c4_i32 : i32 to index
    %c0_46 = arith.constant 0 : index
    %c0_47 = arith.constant 0 : index
    %132 = vector.load %arg1[%131, %c0_46, %c0_47] : memref<8x8x384xf32, #tpu.memory_space<vmem>>, vector<1x8x384xf32>
    %133 = vector.shape_cast %132 : vector<1x8x384xf32> to vector<8x384xf32>
    %134 = vector.extract_strided_slice %133 {offsets = [0, 0], sizes = [8, 128], strides = [1, 1]} : vector<8x384xf32> to vector<8x128xf32>
    %cst_48 = arith.constant dense<0.000000e+00> : vector<8x128xf32>
    %135 = tpu.matmul %126, %4, %cst_48 {dimension_numbers = #tpu.dot_dimension_numbers<[1], [0], [0], [1], [0, 0, 1, 1], [], []>} : vector<8x128xf32>, vector<128x128xf32>, vector<8x128xf32> -> vector<8x128xf32>
    %136 = arith.addf %134, %135 : vector<8x128xf32>
    %137 = arith.negf %136 : vector<8x128xf32>
    %138 = math.exp %137 : vector<8x128xf32>
    %cst_49 = arith.constant 1.000000e+00 : f32
    %139 = vector.broadcast %cst_49 : f32 to vector<8x128xf32>
    %140 = arith.addf %139, %138 : vector<8x128xf32>
    %141 = arith.divf %139, %140 : vector<8x128xf32>
    %142 = vector.extract_strided_slice %133 {offsets = [0, 128], sizes = [8, 128], strides = [1, 1]} : vector<8x384xf32> to vector<8x128xf32>
    %cst_50 = arith.constant dense<0.000000e+00> : vector<8x128xf32>
    %143 = tpu.matmul %126, %6, %cst_50 {dimension_numbers = #tpu.dot_dimension_numbers<[1], [0], [0], [1], [0, 0, 1, 1], [], []>} : vector<8x128xf32>, vector<128x128xf32>, vector<8x128xf32> -> vector<8x128xf32>
    %144 = arith.addf %142, %143 : vector<8x128xf32>
    %145 = math.tanh %144 : vector<8x128xf32>
    %146 = vector.extract_strided_slice %133 {offsets = [0, 256], sizes = [8, 128], strides = [1, 1]} : vector<8x384xf32> to vector<8x128xf32>
    %cst_51 = arith.constant dense<0.000000e+00> : vector<8x128xf32>
    %147 = tpu.matmul %126, %8, %cst_51 {dimension_numbers = #tpu.dot_dimension_numbers<[1], [0], [0], [1], [0, 0, 1, 1], [], []>} : vector<8x128xf32>, vector<128x128xf32>, vector<8x128xf32> -> vector<8x128xf32>
    %148 = arith.addf %146, %147 : vector<8x128xf32>
    %149 = arith.negf %148 : vector<8x128xf32>
    %150 = math.exp %149 : vector<8x128xf32>
    %cst_52 = arith.constant 1.000000e+00 : f32
    %151 = vector.broadcast %cst_52 : f32 to vector<8x128xf32>
    %152 = arith.addf %151, %150 : vector<8x128xf32>
    %153 = arith.divf %151, %152 : vector<8x128xf32>
    %154 = arith.mulf %141, %145 : vector<8x128xf32>
    %155 = math.tanh %154 : vector<8x128xf32>
    %156 = arith.mulf %153, %155 : vector<8x128xf32>
    %157 = arith.index_cast %c4_i32 : i32 to index
    %c0_53 = arith.constant 0 : index
    %c0_54 = arith.constant 0 : index
    %158 = vector.load %arg3[%157, %c0_53, %c0_54] : memref<8x8x128xf32, #tpu.memory_space<vmem>>, vector<1x8x128xf32>
    %159 = vector.shape_cast %158 : vector<1x8x128xf32> to vector<8x128xf32>
    %160 = vector.shape_cast %156 : vector<8x128xf32> to vector<1x8x128xf32>
    tpu.vector_store %arg3[%157, %c0_53, %c0_54], %160 {strides = array<i32>} : memref<8x8x128xf32, #tpu.memory_space<vmem>>, vector<1x8x128xf32>,
    %c5_i32 = arith.constant 5 : i32
    %161 = arith.index_cast %c5_i32 : i32 to index
    %c0_55 = arith.constant 0 : index
    %c0_56 = arith.constant 0 : index
    %162 = vector.load %arg1[%161, %c0_55, %c0_56] : memref<8x8x384xf32, #tpu.memory_space<vmem>>, vector<1x8x384xf32>
    %163 = vector.shape_cast %162 : vector<1x8x384xf32> to vector<8x384xf32>
    %164 = vector.extract_strided_slice %163 {offsets = [0, 0], sizes = [8, 128], strides = [1, 1]} : vector<8x384xf32> to vector<8x128xf32>
    %cst_57 = arith.constant dense<0.000000e+00> : vector<8x128xf32>
    %165 = tpu.matmul %156, %4, %cst_57 {dimension_numbers = #tpu.dot_dimension_numbers<[1], [0], [0], [1], [0, 0, 1, 1], [], []>} : vector<8x128xf32>, vector<128x128xf32>, vector<8x128xf32> -> vector<8x128xf32>
    %166 = arith.addf %164, %165 : vector<8x128xf32>
    %167 = arith.negf %166 : vector<8x128xf32>
    %168 = math.exp %167 : vector<8x128xf32>
    %cst_58 = arith.constant 1.000000e+00 : f32
    %169 = vector.broadcast %cst_58 : f32 to vector<8x128xf32>
    %170 = arith.addf %169, %168 : vector<8x128xf32>
    %171 = arith.divf %169, %170 : vector<8x128xf32>
    %172 = vector.extract_strided_slice %163 {offsets = [0, 128], sizes = [8, 128], strides = [1, 1]} : vector<8x384xf32> to vector<8x128xf32>
    %cst_59 = arith.constant dense<0.000000e+00> : vector<8x128xf32>
    %173 = tpu.matmul %156, %6, %cst_59 {dimension_numbers = #tpu.dot_dimension_numbers<[1], [0], [0], [1], [0, 0, 1, 1], [], []>} : vector<8x128xf32>, vector<128x128xf32>, vector<8x128xf32> -> vector<8x128xf32>
    %174 = arith.addf %172, %173 : vector<8x128xf32>
    %175 = math.tanh %174 : vector<8x128xf32>
    %176 = vector.extract_strided_slice %163 {offsets = [0, 256], sizes = [8, 128], strides = [1, 1]} : vector<8x384xf32> to vector<8x128xf32>
    %cst_60 = arith.constant dense<0.000000e+00> : vector<8x128xf32>
    %177 = tpu.matmul %156, %8, %cst_60 {dimension_numbers = #tpu.dot_dimension_numbers<[1], [0], [0], [1], [0, 0, 1, 1], [], []>} : vector<8x128xf32>, vector<128x128xf32>, vector<8x128xf32> -> vector<8x128xf32>
    %178 = arith.addf %176, %177 : vector<8x128xf32>
    %179 = arith.negf %178 : vector<8x128xf32>
    %180 = math.exp %179 : vector<8x128xf32>
    %cst_61 = arith.constant 1.000000e+00 : f32
    %181 = vector.broadcast %cst_61 : f32 to vector<8x128xf32>
    %182 = arith.addf %181, %180 : vector<8x128xf32>
    %183 = arith.divf %181, %182 : vector<8x128xf32>
    %184 = arith.mulf %171, %175 : vector<8x128xf32>
    %185 = math.tanh %184 : vector<8x128xf32>
    %186 = arith.mulf %183, %185 : vector<8x128xf32>
    %187 = arith.index_cast %c5_i32 : i32 to index
    %c0_62 = arith.constant 0 : index
    %c0_63 = arith.constant 0 : index
    %188 = vector.load %arg3[%187, %c0_62, %c0_63] : memref<8x8x128xf32, #tpu.memory_space<vmem>>, vector<1x8x128xf32>
    %189 = vector.shape_cast %188 : vector<1x8x128xf32> to vector<8x128xf32>
    %190 = vector.shape_cast %186 : vector<8x128xf32> to vector<1x8x128xf32>
    tpu.vector_store %arg3[%187, %c0_62, %c0_63], %190 {strides = array<i32>} : memref<8x8x128xf32, #tpu.memory_space<vmem>>, vector<1x8x128xf32>,
    %c6_i32 = arith.constant 6 : i32
    %191 = arith.index_cast %c6_i32 : i32 to index
    %c0_64 = arith.constant 0 : index
    %c0_65 = arith.constant 0 : index
    %192 = vector.load %arg1[%191, %c0_64, %c0_65] : memref<8x8x384xf32, #tpu.memory_space<vmem>>, vector<1x8x384xf32>
    %193 = vector.shape_cast %192 : vector<1x8x384xf32> to vector<8x384xf32>
    %194 = vector.extract_strided_slice %193 {offsets = [0, 0], sizes = [8, 128], strides = [1, 1]} : vector<8x384xf32> to vector<8x128xf32>
    %cst_66 = arith.constant dense<0.000000e+00> : vector<8x128xf32>
    %195 = tpu.matmul %186, %4, %cst_66 {dimension_numbers = #tpu.dot_dimension_numbers<[1], [0], [0], [1], [0, 0, 1, 1], [], []>} : vector<8x128xf32>, vector<128x128xf32>, vector<8x128xf32> -> vector<8x128xf32>
    %196 = arith.addf %194, %195 : vector<8x128xf32>
    %197 = arith.negf %196 : vector<8x128xf32>
    %198 = math.exp %197 : vector<8x128xf32>
    %cst_67 = arith.constant 1.000000e+00 : f32
    %199 = vector.broadcast %cst_67 : f32 to vector<8x128xf32>
    %200 = arith.addf %199, %198 : vector<8x128xf32>
    %201 = arith.divf %199, %200 : vector<8x128xf32>
    %202 = vector.extract_strided_slice %193 {offsets = [0, 128], sizes = [8, 128], strides = [1, 1]} : vector<8x384xf32> to vector<8x128xf32>
    %cst_68 = arith.constant dense<0.000000e+00> : vector<8x128xf32>
    %203 = tpu.matmul %186, %6, %cst_68 {dimension_numbers = #tpu.dot_dimension_numbers<[1], [0], [0], [1], [0, 0, 1, 1], [], []>} : vector<8x128xf32>, vector<128x128xf32>, vector<8x128xf32> -> vector<8x128xf32>
    %204 = arith.addf %202, %203 : vector<8x128xf32>
    %205 = math.tanh %204 : vector<8x128xf32>
    %206 = vector.extract_strided_slice %193 {offsets = [0, 256], sizes = [8, 128], strides = [1, 1]} : vector<8x384xf32> to vector<8x128xf32>
    %cst_69 = arith.constant dense<0.000000e+00> : vector<8x128xf32>
    %207 = tpu.matmul %186, %8, %cst_69 {dimension_numbers = #tpu.dot_dimension_numbers<[1], [0], [0], [1], [0, 0, 1, 1], [], []>} : vector<8x128xf32>, vector<128x128xf32>, vector<8x128xf32> -> vector<8x128xf32>
    %208 = arith.addf %206, %207 : vector<8x128xf32>
    %209 = arith.negf %208 : vector<8x128xf32>
    %210 = math.exp %209 : vector<8x128xf32>
    %cst_70 = arith.constant 1.000000e+00 : f32
    %211 = vector.broadcast %cst_70 : f32 to vector<8x128xf32>
    %212 = arith.addf %211, %210 : vector<8x128xf32>
    %213 = arith.divf %211, %212 : vector<8x128xf32>
    %214 = arith.mulf %201, %205 : vector<8x128xf32>
    %215 = math.tanh %214 : vector<8x128xf32>
    %216 = arith.mulf %213, %215 : vector<8x128xf32>
    %217 = arith.index_cast %c6_i32 : i32 to index
    %c0_71 = arith.constant 0 : index
    %c0_72 = arith.constant 0 : index
    %218 = vector.load %arg3[%217, %c0_71, %c0_72] : memref<8x8x128xf32, #tpu.memory_space<vmem>>, vector<1x8x128xf32>
    %219 = vector.shape_cast %218 : vector<1x8x128xf32> to vector<8x128xf32>
    %220 = vector.shape_cast %216 : vector<8x128xf32> to vector<1x8x128xf32>
    tpu.vector_store %arg3[%217, %c0_71, %c0_72], %220 {strides = array<i32>} : memref<8x8x128xf32, #tpu.memory_space<vmem>>, vector<1x8x128xf32>,
    %c7_i32 = arith.constant 7 : i32
    %221 = arith.index_cast %c7_i32 : i32 to index
    %c0_73 = arith.constant 0 : index
    %c0_74 = arith.constant 0 : index
    %222 = vector.load %arg1[%221, %c0_73, %c0_74] : memref<8x8x384xf32, #tpu.memory_space<vmem>>, vector<1x8x384xf32>
    %223 = vector.shape_cast %222 : vector<1x8x384xf32> to vector<8x384xf32>
    %224 = vector.extract_strided_slice %223 {offsets = [0, 0], sizes = [8, 128], strides = [1, 1]} : vector<8x384xf32> to vector<8x128xf32>
    %cst_75 = arith.constant dense<0.000000e+00> : vector<8x128xf32>
    %225 = tpu.matmul %216, %4, %cst_75 {dimension_numbers = #tpu.dot_dimension_numbers<[1], [0], [0], [1], [0, 0, 1, 1], [], []>} : vector<8x128xf32>, vector<128x128xf32>, vector<8x128xf32> -> vector<8x128xf32>
    %226 = arith.addf %224, %225 : vector<8x128xf32>
    %227 = arith.negf %226 : vector<8x128xf32>
    %228 = math.exp %227 : vector<8x128xf32>
    %cst_76 = arith.constant 1.000000e+00 : f32
    %229 = vector.broadcast %cst_76 : f32 to vector<8x128xf32>
    %230 = arith.addf %229, %228 : vector<8x128xf32>
    %231 = arith.divf %229, %230 : vector<8x128xf32>
    %232 = vector.extract_strided_slice %223 {offsets = [0, 128], sizes = [8, 128], strides = [1, 1]} : vector<8x384xf32> to vector<8x128xf32>
    %cst_77 = arith.constant dense<0.000000e+00> : vector<8x128xf32>
    %233 = tpu.matmul %216, %6, %cst_77 {dimension_numbers = #tpu.dot_dimension_numbers<[1], [0], [0], [1], [0, 0, 1, 1], [], []>} : vector<8x128xf32>, vector<128x128xf32>, vector<8x128xf32> -> vector<8x128xf32>
    %234 = arith.addf %232, %233 : vector<8x128xf32>
    %235 = math.tanh %234 : vector<8x128xf32>
    %236 = vector.extract_strided_slice %223 {offsets = [0, 256], sizes = [8, 128], strides = [1, 1]} : vector<8x384xf32> to vector<8x128xf32>
    %cst_78 = arith.constant dense<0.000000e+00> : vector<8x128xf32>
    %237 = tpu.matmul %216, %8, %cst_78 {dimension_numbers = #tpu.dot_dimension_numbers<[1], [0], [0], [1], [0, 0, 1, 1], [], []>} : vector<8x128xf32>, vector<128x128xf32>, vector<8x128xf32> -> vector<8x128xf32>
    %238 = arith.addf %236, %237 : vector<8x128xf32>
    %239 = arith.negf %238 : vector<8x128xf32>
    %240 = math.exp %239 : vector<8x128xf32>
    %cst_79 = arith.constant 1.000000e+00 : f32
    %241 = vector.broadcast %cst_79 : f32 to vector<8x128xf32>
    %242 = arith.addf %241, %240 : vector<8x128xf32>
    %243 = arith.divf %241, %242 : vector<8x128xf32>
    %244 = arith.mulf %231, %235 : vector<8x128xf32>
    %245 = math.tanh %244 : vector<8x128xf32>
    %246 = arith.mulf %243, %245 : vector<8x128xf32>
    %247 = arith.index_cast %c7_i32 : i32 to index
    %c0_80 = arith.constant 0 : index
    %c0_81 = arith.constant 0 : index
    %248 = vector.load %arg3[%247, %c0_80, %c0_81] : memref<8x8x128xf32, #tpu.memory_space<vmem>>, vector<1x8x128xf32>
    %249 = vector.shape_cast %248 : vector<1x8x128xf32> to vector<8x128xf32>
    %250 = vector.shape_cast %246 : vector<8x128xf32> to vector<1x8x128xf32>
    tpu.vector_store %arg3[%247, %c0_80, %c0_81], %250 {strides = array<i32>} : memref<8x8x128xf32, #tpu.memory_space<vmem>>, vector<1x8x128xf32>,
    %c8_i32 = arith.constant 8 : i32
    %c0_82 = arith.constant 0 : index
    %c0_83 = arith.constant 0 : index
    %251 = vector.load %arg7[%c0_82, %c0_83] : memref<8x128xf32, #tpu.memory_space<vmem>>, vector<8x128xf32>
    tpu.vector_store %arg7[%c0_82, %c0_83], %246 {strides = array<i32>} : memref<8x128xf32, #tpu.memory_space<vmem>>, vector<8x128xf32>,
    %c0_i32_84 = arith.constant 0 : i32
    %252 = arith.cmpi eq, %arg0, %c0_i32_84 : i32
    %253 = arith.extui %252 : i1 to i32
    %c0_i32_85 = arith.constant 0 : i32
    %254 = arith.cmpi ne, %253, %c0_i32_85 : i32
    scf.if %254 {
      %c0_86 = arith.constant 0 : index
      %c0_87 = arith.constant 0 : index
      %255 = vector.load %arg4[%c0_86, %c0_87] : memref<8x128xf32, #tpu.memory_space<vmem>>, vector<8x128xf32>
      tpu.vector_store %arg4[%c0_86, %c0_87], %244 {strides = array<i32>} : memref<8x128xf32, #tpu.memory_space<vmem>>, vector<8x128xf32>,
      %c0_88 = arith.constant 0 : index
      %c0_89 = arith.constant 0 : index
      %256 = vector.load %arg5[%c0_88, %c0_89] : memref<8x128xf32, #tpu.memory_space<vmem>>, vector<8x128xf32>
      tpu.vector_store %arg5[%c0_88, %c0_89], %246 {strides = array<i32>} : memref<8x128xf32, #tpu.memory_space<vmem>>, vector<8x128xf32>,
    } else {
    }
    return
  }
  func.func @transform_0(%arg0: i32) -> (i32, i32, i32) {
    %c0_i32 = arith.constant 0 : i32
    %c0_i32_0 = arith.constant 0 : i32
    %c0_i32_1 = arith.constant 0 : i32
    return %arg0, %c0_i32, %c0_i32_0 : i32, i32, i32
  }
  func.func @transform_2(%arg0: i32) -> (i32, i32, i32) {
    %c0_i32 = arith.constant 0 : i32
    %c0_i32_0 = arith.constant 0 : i32
    %c0_i32_1 = arith.constant 0 : i32
    return %arg0, %c0_i32, %c0_i32_0 : i32, i32, i32
  }
  func.func @transform_3(%arg0: i32) -> (i32, i32) {
    %c0_i32 = arith.constant 0 : i32
    %c0_i32_0 = arith.constant 0 : i32
    %c0_i32_1 = arith.constant 0 : i32
    return %c0_i32, %c0_i32_0 : i32, i32
  }
  func.func @transform_4(%arg0: i32) -> (i32, i32) {
    %c0_i32 = arith.constant 0 : i32
    %c0_i32_0 = arith.constant 0 : i32
    %c0_i32_1 = arith.constant 0 : i32
    return %c0_i32, %c0_i32_0 : i32, i32
  }
}

</mosaic_0001>

<llo_original>
// kernel: tpu_custom_call.1
$region0: #{tpu_custom_call.1}
  #allocation0 [shape = 'u32[]', space=smem, size = 0x4, offset = 0x4, fixed_abs, tag = 'smem constant byte address 0x4 - core index']
  #allocation1 [shape = 'u32[144,128]{1,0:T(1,128)}', space=vmem, size = 0x12000, scoped, tag = 'internal scratch']
  #allocation2 [shape = 'f32[3,128,128]{2,1,0:T(8,128)}', space=vmem, size = 0x30000, scoped, tag = 'scratch operand']
  #allocation3 [shape = 'f32[8,128]{1,0:T(8,128)}', space=vmem, size = 0x1000, scoped, tag = 'scratch operand']
  #allocation4 [shape = 's32[1]{0}', space=sflag, size = 0x4, scoped, tag = 'scratch operand']
  #allocation12 [shape = 's32[]', space=sflag, size = 0x4, offset = 0, fixed_abs, tag = 'sflag constant byte address 0x0 - dummy sync flag']
  #allocation13 [shape = 's32[]', space=sflag, size = 0x4, offset = 0, fixed_abs, tag = 'sflag constant byte address 0x0 - dummy sync flag']
  #allocation14 [shape = 'u32[]', space=smem, size = 0x4, offset = 0x44, fixed_abs, tag = 'smem constant byte address 0x44 - assertion arg 0']
  #allocation15 [shape = 'u32[]', space=smem, size = 0x4, offset = 0x48, fixed_abs, tag = 'smem constant byte address 0x48 - assertion arg 1']
  %s0 = inlined_call_operand.hbm [shape: f32[8,8,384], index: 0, kind: input, shape index: {}]
  %s1 = inlined_call_operand.hbm [shape: f32[3,128,128], index: 1, kind: input, shape index: {}]
  %s2 = inlined_call_operand.hbm [shape: f32[8,8,128], index: 2, kind: output, shape index: {0}]
  %s3 = inlined_call_operand.hbm [shape: f32[8,128], index: 3, kind: output, shape index: {1}]
  %s4 = inlined_call_operand.hbm [shape: f32[8,128], index: 4, kind: output, shape index: {2}]
  %5 = xla_tuple %s2, %s3, %s4
  %s6 = sld [smem:[#allocation0]]
  $region46: #{tpu_custom_call.1} parent=0
    _
  %s8 = ssub.s32 1, %s6
  %s9 = scalar_select 0, %s8, %s6
  $region1: #{tpu_custom_call.1} parent=0
    #allocation5 [shape = 'u8[98304]{0}', space=vmem, size = 0x18000, scoped, tag = 'input window, operand 0, single buffered']
    #allocation6 [shape = 's32[1]{0}', space=sflag, size = 0x4, scoped, tag = 'scoped memory for tpu_custom_call.1']
    #allocation7 [shape = 's32[1]{0}', space=sflag, size = 0x4, scoped, tag = 'scoped memory for tpu_custom_call.1']
    #allocation8 [shape = 'u8[32768]{0}', space=vmem, size = 0x8000, scoped, tag = 'output window, operand 0, single buffered']
    #allocation9 [shape = 'u8[4096]{0}', space=vmem, size = 0x1000, scoped, tag = 'output window, operand 1, single buffered']
    #allocation10 [shape = 's32[1]{0}', space=sflag, size = 0x4, scoped, tag = 'scoped memory for tpu_custom_call.1']
    #allocation11 [shape = 'u8[4096]{0}', space=vmem, size = 0x1000, scoped, tag = 'output window, operand 2, single buffered']
    %10 = vsyncpa [#allocation6], 0
    %11 = vsyncpa [#allocation7], 0
    %12 = vsyncpa [#allocation10], 0
    // Predicated region
    $region2: #{tpu_custom_call.1} parent=1 // pred_check
      _
    $region3: #{tpu_custom_call.1} parent=1 // pred_check_branch
      %14 = sbr.rel (0) target = $region5
    $region4: #{tpu_custom_call.1} parent=1 // pred_region
      %s16 = ssub.s32 3072, 3072
      %17 = vsyncadd [#allocation6], %s16
      %s18 = sshll.u32 [#allocation5], 4
      %s19 = int_to_ptr.vmem [resolvable:$true] %s18
      %24 = dma.hbm_to_vmem [thread:$0]  %s0, 3072, %s19, [#allocation6], 384, 384, 24
    $region5: #{tpu_custom_call.1} parent=1 // pred_fallthru
      _
    // Predicated region
    $region6: #{tpu_custom_call.1} parent=1 // pred_check
      _
    $region7: #{tpu_custom_call.1} parent=1 // pred_check_branch
      %26 = sbr.rel (0) target = $region9
    $region8: #{tpu_custom_call.1} parent=1 // pred_region
      %27 = dma.done [#allocation6], 3072
    $region9: #{tpu_custom_call.1} parent=1 // pred_fallthru
      _
    %p28 = scmp.eq.s32.totalorder 0, 0
    // Predicated region
    $region10: #{tpu_custom_call.1} parent=1 // pred_check
      %p29 = pneg %p28
    $region11: #{tpu_custom_call.1} parent=1 // pred_check_branch
      %31 = sbr.rel (%p29) target = $region13
    $region12: #{tpu_custom_call.1} parent=1 // pred_region
      %32 = vst [vmem:[#allocation3] sm:$0xff] 0.0
      // Predicated region
      $region14: #{tpu_custom_call.1} parent=12 // pred_check
        _
      $region15: #{tpu_custom_call.1} parent=12 // pred_check_branch
        %34 = sbr.rel target = $region17
      $region16: #{tpu_custom_call.1} parent=12 // pred_region
        %35 = sst [smem:[#allocation14]] [#allocation13]
        %36 = sst [smem:[#allocation15]] [#allocation12]
      $region17: #{tpu_custom_call.1} parent=12 // pred_fallthru
        _
      %38 = shalt.err (0)
      %s40 = sshll.u32 [#allocation2], 4
      %s41 = int_to_ptr.vmem [resolvable:$true] %s40
      %43 = dma.hbm_to_vmem [thread:$0]  %s1, 6144, %s41, [#allocation4]
      %s44 = smul.u32 3, 128
      %s45 = smul.u32 %s44, 1
      %s46 = sshll.u32 %s45, 4
      %47 = dma.done [#allocation4], %s46
    $region13: #{tpu_custom_call.1} parent=1 // pred_fallthru
      _
    %v48 = vld [vmem:[#allocation2] sm:$0xff]
    %v49 = vld [vmem:[#allocation2 + $0x8] sm:$0xff]
    %v50 = vld [vmem:[#allocation2 + $0x10] sm:$0xff]
    %v51 = vld [vmem:[#allocation2 + $0x18] sm:$0xff]
    %v52 = vld [vmem:[#allocation2 + $0x20] sm:$0xff]
    %v53 = vld [vmem:[#allocation2 + $0x28] sm:$0xff]
    %v54 = vld [vmem:[#allocation2 + $0x30] sm:$0xff]
    %v55 = vld [vmem:[#allocation2 + $0x38] sm:$0xff]
    %v56 = vld [vmem:[#allocation2 + $0x40] sm:$0xff]
    %v57 = vld [vmem:[#allocation2 + $0x48] sm:$0xff]
    %v58 = vld [vmem:[#allocation2 + $0x50] sm:$0xff]
    %v59 = vld [vmem:[#allocation2 + $0x58] sm:$0xff]
    %v60 = vld [vmem:[#allocation2 + $0x60] sm:$0xff]
    %v61 = vld [vmem:[#allocation2 + $0x68] sm:$0xff]
    %v62 = vld [vmem:[#allocation2 + $0x70] sm:$0xff]
    %v63 = vld [vmem:[#allocation2 + $0x78] sm:$0xff]
    %s64 = scalar_lea.vmem [#allocation2], 128
    %v65 = vld [vmem:[%s64] sm:$0xff]
    %v66 = vld [vmem:[%s64 + $0x8] sm:$0xff]
    %v67 = vld [vmem:[%s64 + $0x10] sm:$0xff]
    %v68 = vld [vmem:[%s64 + $0x18] sm:$0xff]
    %v69 = vld [vmem:[%s64 + $0x20] sm:$0xff]
    %v70 = vld [vmem:[%s64 + $0x28] sm:$0xff]
    %v71 = vld [vmem:[%s64 + $0x30] sm:$0xff]
    %v72 = vld [vmem:[%s64 + $0x38] sm:$0xff]
    %v73 = vld [vmem:[%s64 + $0x40] sm:$0xff]
    %v74 = vld [vmem:[%s64 + $0x48] sm:$0xff]
    %v75 = vld [vmem:[%s64 + $0x50] sm:$0xff]
    %v76 = vld [vmem:[%s64 + $0x58] sm:$0xff]
    %v77 = vld [vmem:[%s64 + $0x60] sm:$0xff]
    %v78 = vld [vmem:[%s64 + $0x68] sm:$0xff]
    %v79 = vld [vmem:[%s64 + $0x70] sm:$0xff]
    %v80 = vld [vmem:[%s64 + $0x78] sm:$0xff]
    %s81 = scalar_lea.vmem [#allocation2], 256
    %v82 = vld [vmem:[%s81] sm:$0xff]
    %v83 = vld [vmem:[%s81 + $0x8] sm:$0xff]
    %v84 = vld [vmem:[%s81 + $0x10] sm:$0xff]
    %v85 = vld [vmem:[%s81 + $0x18] sm:$0xff]
    %v86 = vld [vmem:[%s81 + $0x20] sm:$0xff]
    %v87 = vld [vmem:[%s81 + $0x28] sm:$0xff]
    %v88 = vld [vmem:[%s81 + $0x30] sm:$0xff]
    %v89 = vld [vmem:[%s81 + $0x38] sm:$0xff]
    %v90 = vld [vmem:[%s81 + $0x40] sm:$0xff]
    %v91 = vld [vmem:[%s81 + $0x48] sm:$0xff]
    %v92 = vld [vmem:[%s81 + $0x50] sm:$0xff]
    %v93 = vld [vmem:[%s81 + $0x58] sm:$0xff]
    %v94 = vld [vmem:[%s81 + $0x60] sm:$0xff]
    %v95 = vld [vmem:[%s81 + $0x68] sm:$0xff]
    %v96 = vld [vmem:[%s81 + $0x70] sm:$0xff]
    %v97 = vld [vmem:[%s81 + $0x78] sm:$0xff]
    %v98 = vld [vmem:[#allocation3] sm:$0xff]
    %v99 = vld [vmem:[#allocation5] sm:$0xff]
    %v100 = vld [vmem:[#allocation5 + $0x8] sm:$0xff]
    %v101 = vld [vmem:[#allocation5 + $0x10] sm:$0xff]
    %102 = vmatprep.subr.mxu0 0.0
    %103 = vmatpush1.msra.mxu0 %v63
    %104 = vmatprep.subr.mxu0 0.0
    %105 = vmatpush1.msra.mxu0 %v62
    %106 = vmatprep.subr.mxu0 0.0
    %107 = vmatpush1.msra.mxu0 %v61
    %108 = vmatprep.subr.mxu0 0.0
    %109 = vmatpush1.msra.mxu0 %v60
    %110 = vmatprep.subr.mxu0 0.0
    %111 = vmatpush1.msra.mxu0 %v59
    %112 = vmatprep.subr.mxu0 0.0
    %113 = vmatpush1.msra.mxu0 %v58
    %114 = vmatprep.subr.mxu0 0.0
    %115 = vmatpush1.msra.mxu0 %v57
    %116 = vmatprep.subr.mxu0 0.0
    %117 = vmatpush1.msra.mxu0 %v56
    %118 = vmatprep.subr.mxu0 0.0
    %119 = vmatpush1.msra.mxu0 %v55
    %120 = vmatprep.subr.mxu0 0.0
    %121 = vmatpush1.msra.mxu0 %v54
    %122 = vmatprep.subr.mxu0 0.0
    %123 = vmatpush1.msra.mxu0 %v53
    %124 = vmatprep.subr.mxu0 0.0
    %125 = vmatpush1.msra.mxu0 %v52
    %126 = vmatprep.subr.mxu0 0.0
    %127 = vmatpush1.msra.mxu0 %v51
    %128 = vmatprep.subr.mxu0 0.0
    %129 = vmatpush1.msra.mxu0 %v50
    %130 = vmatprep.subr.mxu0 0.0
    %131 = vmatpush1.msra.mxu0 %v49
    %132 = vmatprep.subr.mxu0 0.0
    %133 = vmatpush1.msra.mxu0 %v48
    %134 = vmatprep.subr.mxu0 0.0
    %135 = vmatpush2.msra.mxu0 0.0
    %136 = vmatprep.subr.mxu0 0.0
    %137 = vmatpush2.msra.mxu0 0.0
    %138 = vmatprep.subr.mxu0 0.0
    %139 = vmatpush2.msra.mxu0 0.0
    %140 = vmatprep.subr.mxu0 0.0
    %141 = vmatpush2.msra.mxu0 0.0
    %142 = vmatprep.subr.mxu0 0.0
    %143 = vmatpush2.msra.mxu0 0.0
    %144 = vmatprep.subr.mxu0 0.0
    %145 = vmatpush2.msra.mxu0 0.0
    %146 = vmatprep.subr.mxu0 0.0
    %147 = vmatpush2.msra.mxu0 0.0
    %148 = vmatprep.subr.mxu0 0.0
    %149 = vmatpush2.msra.mxu0 0.0
    %150 = vmatprep.subr.mxu0 0.0
    %151 = vmatpush2.msra.mxu0 0.0
    %152 = vmatprep.subr.mxu0 0.0
    %153 = vmatpush2.msra.mxu0 0.0
    %154 = vmatprep.subr.mxu0 0.0
    %155 = vmatpush2.msra.mxu0 0.0
    %156 = vmatprep.subr.mxu0 0.0
    %157 = vmatpush2.msra.mxu0 0.0
    %158 = vmatprep.subr.mxu0 0.0
    %159 = vmatpush2.msra.mxu0 0.0
    %160 = vmatprep.subr.mxu0 0.0
    %161 = vmatpush2.msra.mxu0 0.0
    %162 = vmatprep.subr.mxu0 0.0
    %163 = vmatpush2.msra.mxu0 0.0
    %164 = vmatprep.subr.mxu0 0.0
    %165 = vmatpush2.msra.mxu0 0.0
    %166 = vmatprep.mubr.f32.mxu0 0.0
    %167 = vmatmul.mubr.f32.gmra.mxu0 %v98
    %v168 = vpop.f32.mrf.mxu0
    %v169 = vadd.f32 0.0, %v168
    %v170 = vpop.f32.mrf.mxu0
    %171 = vdwg.mxu0
    %v172 = vadd.f32 %v99, %v169
    %v173 = vxor.u32 %v172, 2147483648
    %v174 = vmul.f32 %v173, 1.442695
    %v175 = vpow.pop %v174
    %v176 = vadd.f32 %v175, 1.0
    %v177 = vrcp.pop %v176
    %v178 = vmul.f32 1.0, %v177
    %179 = vmatprep.subr.mxu0 0.0
    %180 = vmatpush1.msra.mxu0 %v80
    %181 = vmatprep.subr.mxu0 0.0
    %182 = vmatpush1.msra.mxu0 %v79
    %183 = vmatprep.subr.mxu0 0.0
    %184 = vmatpush1.msra.mxu0 %v78
    %185 = vmatprep.subr.mxu0 0.0
    %186 = vmatpush1.msra.mxu0 %v77
    %187 = vmatprep.subr.mxu0 0.0
    %188 = vmatpush1.msra.mxu0 %v76
    %189 = vmatprep.subr.mxu0 0.0
    %190 = vmatpush1.msra.mxu0 %v75
    %191 = vmatprep.subr.mxu0 0.0
    %192 = vmatpush1.msra.mxu0 %v74
    %193 = vmatprep.subr.mxu0 0.0
    %194 = vmatpush1.msra.mxu0 %v73
    %195 = vmatprep.subr.mxu0 0.0
    %196 = vmatpush1.msra.mxu0 %v72
    %197 = vmatprep.subr.mxu0 0.0
    %198 = vmatpush1.msra.mxu0 %v71
    %199 = vmatprep.subr.mxu0 0.0
    %200 = vmatpush1.msra.mxu0 %v70
    %201 = vmatprep.subr.mxu0 0.0
    %202 = vmatpush1.msra.mxu0 %v69
    %203 = vmatprep.subr.mxu0 0.0
    %204 = vmatpush1.msra.mxu0 %v68
    %205 = vmatprep.subr.mxu0 0.0
    %206 = vmatpush1.msra.mxu0 %v67
    %207 = vmatprep.subr.mxu0 0.0
    %208 = vmatpush1.msra.mxu0 %v66
    %209 = vmatprep.subr.mxu0 0.0
    %210 = vmatpush1.msra.mxu0 %v65
    %211 = vmatprep.subr.mxu0 0.0
    %212 = vmatpush2.msra.mxu0 0.0
    %213 = vmatprep.subr.mxu0 0.0
    %214 = vmatpush2.msra.mxu0 0.0
    %215 = vmatprep.subr.mxu0 0.0
    %216 = vmatpush2.msra.mxu0 0.0
    %217 = vmatprep.subr.mxu0 0.0
    %218 = vmatpush2.msra.mxu0 0.0
    %219 = vmatprep.subr.mxu0 0.0
    %220 = vmatpush2.msra.mxu0 0.0
    %221 = vmatprep.subr.mxu0 0.0
    %222 = vmatpush2.msra.mxu0 0.0
    %223 = vmatprep.subr.mxu0 0.0
    %224 = vmatpush2.msra.mxu0 0.0
    %225 = vmatprep.subr.mxu0 0.0
    %226 = vmatpush2.msra.mxu0 0.0
    %227 = vmatprep.subr.mxu0 0.0
    %228 = vmatpush2.msra.mxu0 0.0
    %229 = vmatprep.subr.mxu0 0.0
    %230 = vmatpush2.msra.mxu0 0.0
    %231 = vmatprep.subr.mxu0 0.0
    %232 = vmatpush2.msra.mxu0 0.0
    %233 = vmatprep.subr.mxu0 0.0
    %234 = vmatpush2.msra.mxu0 0.0
    %235 = vmatprep.subr.mxu0 0.0
    %236 = vmatpush2.msra.mxu0 0.0
    %237 = vmatprep.subr.mxu0 0.0
    %238 = vmatpush2.msra.mxu0 0.0
    %239 = vmatprep.subr.mxu0 0.0
    %240 = vmatpush2.msra.mxu0 0.0
    %241 = vmatprep.subr.mxu0 0.0
    %242 = vmatpush2.msra.mxu0 0.0
    %243 = vmatprep.mubr.f32.mxu0 0.0
    %244 = vmatmul.mubr.f32.gmra.mxu0 %v98
    %v245 = vpop.f32.mrf.mxu0
    %v246 = vadd.f32 0.0, %v245
    %v247 = vpop.f32.mrf.mxu0
    %248 = vdwg.mxu0
    %v249 = vadd.f32 %v100, %v246
    %v250 = vtanh.pop %v249
    %251 = vmatprep.subr.mxu0 0.0
    %252 = vmatpush1.msra.mxu0 %v97
    %253 = vmatprep.subr.mxu0 0.0
    %254 = vmatpush1.msra.mxu0 %v96
    %255 = vmatprep.subr.mxu0 0.0
    %256 = vmatpush1.msra.mxu0 %v95
    %257 = vmatprep.subr.mxu0 0.0
    %258 = vmatpush1.msra.mxu0 %v94
    %259 = vmatprep.subr.mxu0 0.0
    %260 = vmatpush1.msra.mxu0 %v93
    %261 = vmatprep.subr.mxu0 0.0
    %262 = vmatpush1.msra.mxu0 %v92
    %263 = vmatprep.subr.mxu0 0.0
    %264 = vmatpush1.msra.mxu0 %v91
    %265 = vmatprep.subr.mxu0 0.0
    %266 = vmatpush1.msra.mxu0 %v90
    %267 = vmatprep.subr.mxu0 0.0
    %268 = vmatpush1.msra.mxu0 %v89
    %269 = vmatprep.subr.mxu0 0.0
    %270 = vmatpush1.msra.mxu0 %v88
    %271 = vmatprep.subr.mxu0 0.0
    %272 = vmatpush1.msra.mxu0 %v87
    %273 = vmatprep.subr.mxu0 0.0
    %274 = vmatpush1.msra.mxu0 %v86
    %275 = vmatprep.subr.mxu0 0.0
    %276 = vmatpush1.msra.mxu0 %v85
    %277 = vmatprep.subr.mxu0 0.0
    %278 = vmatpush1.msra.mxu0 %v84
    %279 = vmatprep.subr.mxu0 0.0
    %280 = vmatpush1.msra.mxu0 %v83
    %281 = vmatprep.subr.mxu0 0.0
    %282 = vmatpush1.msra.mxu0 %v82
    %283 = vmatprep.subr.mxu0 0.0
    %284 = vmatpush2.msra.mxu0 0.0
    %285 = vmatprep.subr.mxu0 0.0
    %286 = vmatpush2.msra.mxu0 0.0
    %287 = vmatprep.subr.mxu0 0.0
    %288 = vmatpush2.msra.mxu0 0.0
    %289 = vmatprep.subr.mxu0 0.0
    %290 = vmatpush2.msra.mxu0 0.0
    %291 = vmatprep.subr.mxu0 0.0
    %292 = vmatpush2.msra.mxu0 0.0
    %293 = vmatprep.subr.mxu0 0.0
    %294 = vmatpush2.msra.mxu0 0.0
    %295 = vmatprep.subr.mxu0 0.0
    %296 = vmatpush2.msra.mxu0 0.0
    %297 = vmatprep.subr.mxu0 0.0
    %298 = vmatpush2.msra.mxu0 0.0
    %299 = vmatprep.subr.mxu0 0.0
    %300 = vmatpush2.msra.mxu0 0.0
    %301 = vmatprep.subr.mxu0 0.0
    %302 = vmatpush2.msra.mxu0 0.0
    %303 = vmatprep.subr.mxu0 0.0
    %304 = vmatpush2.msra.mxu0 0.0
    %305 = vmatprep.subr.mxu0 0.0
    %306 = vmatpush2.msra.mxu0 0.0
    %307 = vmatprep.subr.mxu0 0.0
    %308 = vmatpush2.msra.mxu0 0.0
    %309 = vmatprep.subr.mxu0 0.0
    %310 = vmatpush2.msra.mxu0 0.0
    %311 = vmatprep.subr.mxu0 0.0
    %312 = vmatpush2.msra.mxu0 0.0
    %313 = vmatprep.subr.mxu0 0.0
    %314 = vmatpush2.msra.mxu0 0.0
    %315 = vmatprep.mubr.f32.mxu0 0.0
    %316 = vmatmul.mubr.f32.gmra.mxu0 %v98
    %v317 = vpop.f32.mrf.mxu0
    %v318 = vadd.f32 0.0, %v317
    %v319 = vpop.f32.mrf.mxu0
    %320 = vdwg.mxu0
    %v321 = vadd.f32 %v101, %v318
    %v322 = vxor.u32 %v321, 2147483648
    %v323 = vmul.f32 %v322, 1.442695
    %v324 = vpow.pop %v323
    %v325 = vadd.f32 %v324, 1.0
    %v326 = vrcp.pop %v325
    %v327 = vmul.f32 1.0, %v326
    %v328 = vmul.f32 %v178, %v250
    %v329 = vtanh.pop %v328
    %v330 = vmul.f32 %v327, %v329
    %331 = vst [vmem:[#allocation8] sm:$0xff] %v330
    %s332 = scalar_lea.vmem [#allocation5], 24
    %v333 = vld [vmem:[%s332] sm:$0xff]
    %v334 = vld [vmem:[%s332 + $0x8] sm:$0xff]
    %v335 = vld [vmem:[%s332 + $0x10] sm:$0xff]
    %336 = vmatprep.subr.mxu0 0.0
    %337 = vmatpush1.msra.mxu0 %v63
    %338 = vmatprep.subr.mxu0 0.0
    %339 = vmatpush1.msra.mxu0 %v62
    %340 = vmatprep.subr.mxu0 0.0
    %341 = vmatpush1.msra.mxu0 %v61
    %342 = vmatprep.subr.mxu0 0.0
    %343 = vmatpush1.msra.mxu0 %v60
    %344 = vmatprep.subr.mxu0 0.0
    %345 = vmatpush1.msra.mxu0 %v59
    %346 = vmatprep.subr.mxu0 0.0
    %347 = vmatpush1.msra.mxu0 %v58
    %348 = vmatprep.subr.mxu0 0.0
    %349 = vmatpush1.msra.mxu0 %v57
    %350 = vmatprep.subr.mxu0 0.0
    %351 = vmatpush1.msra.mxu0 %v56
    %352 = vmatprep.subr.mxu0 0.0
    %353 = vmatpush1.msra.mxu0 %v55
    %354 = vmatprep.subr.mxu0 0.0
    %355 = vmatpush1.msra.mxu0 %v54
    %356 = vmatprep.subr.mxu0 0.0
    %357 = vmatpush1.msra.mxu0 %v53
    %358 = vmatprep.subr.mxu0 0.0
    %359 = vmatpush1.msra.mxu0 %v52
    %360 = vmatprep.subr.mxu0 0.0
    %361 = vmatpush1.msra.mxu0 %v51
    %362 = vmatprep.subr.mxu0 0.0
    %363 = vmatpush1.msra.mxu0 %v50
    %364 = vmatprep.subr.mxu0 0.0
    %365 = vmatpush1.msra.mxu0 %v49
    %366 = vmatprep.subr.mxu0 0.0
    %367 = vmatpush1.msra.mxu0 %v48
    %368 = vmatprep.subr.mxu0 0.0
    %369 = vmatpush2.msra.mxu0 0.0
    %370 = vmatprep.subr.mxu0 0.0
    %371 = vmatpush2.msra.mxu0 0.0
    %372 = vmatprep.subr.mxu0 0.0
    %373 = vmatpush2.msra.mxu0 0.0
    %374 = vmatprep.subr.mxu0 0.0
    %375 = vmatpush2.msra.mxu0 0.0
    %376 = vmatprep.subr.mxu0 0.0
    %377 = vmatpush2.msra.mxu0 0.0
    %378 = vmatprep.subr.mxu0 0.0
    %379 = vmatpush2.msra.mxu0 0.0
    %380 = vmatprep.subr.mxu0 0.0
    %381 = vmatpush2.msra.mxu0 0.0
    %382 = vmatprep.subr.mxu0 0.0
    %383 = vmatpush2.msra.mxu0 0.0
    %384 = vmatprep.subr.mxu0 0.0
    %385 = vmatpush2.msra.mxu0 0.0
    %386 = vmatprep.subr.mxu0 0.0
    %387 = vmatpush2.msra.mxu0 0.0
    %388 = vmatprep.subr.mxu0 0.0
    %389 = vmatpush2.msra.mxu0 0.0
    %390 = vmatprep.subr.mxu0 0.0
    %391 = vmatpush2.msra.mxu0 0.0
    %392 = vmatprep.subr.mxu0 0.0
    %393 = vmatpush2.msra.mxu0 0.0
    %394 = vmatprep.subr.mxu0 0.0
    %395 = vmatpush2.msra.mxu0 0.0
    %396 = vmatprep.subr.mxu0 0.0
    %397 = vmatpush2.msra.mxu0 0.0
    %398 = vmatprep.subr.mxu0 0.0
    %399 = vmatpush2.msra.mxu0 0.0
    %400 = vmatprep.mubr.f32.mxu0 0.0
    %401 = vmatmul.mubr.f32.gmra.mxu0 %v330
    %v402 = vpop.f32.mrf.mxu0
    %v403 = vadd.f32 0.0, %v402
    %v404 = vpop.f32.mrf.mxu0
    %405 = vdwg.mxu0
    %v406 = vadd.f32 %v333, %v403
    %v407 = vxor.u32 %v406, 2147483648
    %v408 = vmul.f32 %v407, 1.442695
    %v409 = vpow.pop %v408
    %v410 = vadd.f32 %v409, 1.0
    %v411 = vrcp.pop %v410
    %v412 = vmul.f32 1.0, %v411
    %413 = vmatprep.subr.mxu0 0.0
    %414 = vmatpush1.msra.mxu0 %v80
    %415 = vmatprep.subr.mxu0 0.0
    %416 = vmatpush1.msra.mxu0 %v79
    %417 = vmatprep.subr.mxu0 0.0
    %418 = vmatpush1.msra.mxu0 %v78
    %419 = vmatprep.subr.mxu0 0.0
    %420 = vmatpush1.msra.mxu0 %v77
    %421 = vmatprep.subr.mxu0 0.0
    %422 = vmatpush1.msra.mxu0 %v76
    %423 = vmatprep.subr.mxu0 0.0
    %424 = vmatpush1.msra.mxu0 %v75
    %425 = vmatprep.subr.mxu0 0.0
    %426 = vmatpush1.msra.mxu0 %v74
    %427 = vmatprep.subr.mxu0 0.0
    %428 = vmatpush1.msra.mxu0 %v73
    %429 = vmatprep.subr.mxu0 0.0
    %430 = vmatpush1.msra.mxu0 %v72
    %431 = vmatprep.subr.mxu0 0.0
    %432 = vmatpush1.msra.mxu0 %v71
    %433 = vmatprep.subr.mxu0 0.0
    %434 = vmatpush1.msra.mxu0 %v70
    %435 = vmatprep.subr.mxu0 0.0
    %436 = vmatpush1.msra.mxu0 %v69
    %437 = vmatprep.subr.mxu0 0.0
    %438 = vmatpush1.msra.mxu0 %v68
    %439 = vmatprep.subr.mxu0 0.0
    %440 = vmatpush1.msra.mxu0 %v67
    %441 = vmatprep.subr.mxu0 0.0
    %442 = vmatpush1.msra.mxu0 %v66
    %443 = vmatprep.subr.mxu0 0.0
    %444 = vmatpush1.msra.mxu0 %v65
    %445 = vmatprep.subr.mxu0 0.0
    %446 = vmatpush2.msra.mxu0 0.0
    %447 = vmatprep.subr.mxu0 0.0
    %448 = vmatpush2.msra.mxu0 0.0
    %449 = vmatprep.subr.mxu0 0.0
    %450 = vmatpush2.msra.mxu0 0.0
    %451 = vmatprep.subr.mxu0 0.0
    %452 = vmatpush2.msra.mxu0 0.0
    %453 = vmatprep.subr.mxu0 0.0
    %454 = vmatpush2.msra.mxu0 0.0
    %455 = vmatprep.subr.mxu0 0.0
    %456 = vmatpush2.msra.mxu0 0.0
    %457 = vmatprep.subr.mxu0 0.0
    %458 = vmatpush2.msra.mxu0 0.0
    %459 = vmatprep.subr.mxu0 0.0
    %460 = vmatpush2.msra.mxu0 0.0
    %461 = vmatprep.subr.mxu0 0.0
    %462 = vmatpush2.msra.mxu0 0.0
    %463 = vmatprep.subr.mxu0 0.0
    %464 = vmatpush2.msra.mxu0 0.0
    %465 = vmatprep.subr.mxu0 0.0
    %466 = vmatpush2.msra.mxu0 0.0
    %467 = vmatprep.subr.mxu0 0.0
    %468 = vmatpush2.msra.mxu0 0.0
    %469 = vmatprep.subr.mxu0 0.0
    %470 = vmatpush2.msra.mxu0 0.0
    %471 = vmatprep.subr.mxu0 0.0
    %472 = vmatpush2.msra.mxu0 0.0
    %473 = vmatprep.subr.mxu0 0.0
    %474 = vmatpush2.msra.mxu0 0.0
    %475 = vmatprep.subr.mxu0 0.0
    %476 = vmatpush2.msra.mxu0 0.0
    %477 = vmatprep.mubr.f32.mxu0 0.0
    %478 = vmatmul.mubr.f32.gmra.mxu0 %v330
    %v479 = vpop.f32.mrf.mxu0
    %v480 = vadd.f32 0.0, %v479
    %v481 = vpop.f32.mrf.mxu0
    %482 = vdwg.mxu0
    %v483 = vadd.f32 %v334, %v480
    %v484 = vtanh.pop %v483
    %485 = vmatprep.subr.mxu0 0.0
    %486 = vmatpush1.msra.mxu0 %v97
    %487 = vmatprep.subr.mxu0 0.0
    %488 = vmatpush1.msra.mxu0 %v96
    %489 = vmatprep.subr.mxu0 0.0
    %490 = vmatpush1.msra.mxu0 %v95
    %491 = vmatprep.subr.mxu0 0.0
    %492 = vmatpush1.msra.mxu0 %v94
    %493 = vmatprep.subr.mxu0 0.0
    %494 = vmatpush1.msra.mxu0 %v93
    %495 = vmatprep.subr.mxu0 0.0
    %496 = vmatpush1.msra.mxu0 %v92
    %497 = vmatprep.subr.mxu0 0.0
    %498 = vmatpush1.msra.mxu0 %v91
    %499 = vmatprep.subr.mxu0 0.0
    %500 = vmatpush1.msra.mxu0 %v90
    %501 = vmatprep.subr.mxu0 0.0
    %502 = vmatpush1.msra.mxu0 %v89
    %503 = vmatprep.subr.mxu0 0.0
    %504 = vmatpush1.msra.mxu0 %v88
    %505 = vmatprep.subr.mxu0 0.0
    %506 = vmatpush1.msra.mxu0 %v87
    %507 = vmatprep.subr.mxu0 0.0
    %508 = vmatpush1.msra.mxu0 %v86
    %509 = vmatprep.subr.mxu0 0.0
    %510 = vmatpush1.msra.mxu0 %v85
    %511 = vmatprep.subr.mxu0 0.0
    %512 = vmatpush1.msra.mxu0 %v84
    %513 = vmatprep.subr.mxu0 0.0
    %514 = vmatpush1.msra.mxu0 %v83
    %515 = vmatprep.subr.mxu0 0.0
    %516 = vmatpush1.msra.mxu0 %v82
    %517 = vmatprep.subr.mxu0 0.0
    %518 = vmatpush2.msra.mxu0 0.0
    %519 = vmatprep.subr.mxu0 0.0
    %520 = vmatpush2.msra.mxu0 0.0
    %521 = vmatprep.subr.mxu0 0.0
    %522 = vmatpush2.msra.mxu0 0.0
    %523 = vmatprep.subr.mxu0 0.0
    %524 = vmatpush2.msra.mxu0 0.0
    %525 = vmatprep.subr.mxu0 0.0
    %526 = vmatpush2.msra.mxu0 0.0
    %527 = vmatprep.subr.mxu0 0.0
    %528 = vmatpush2.msra.mxu0 0.0
    %529 = vmatprep.subr.mxu0 0.0
    %530 = vmatpush2.msra.mxu0 0.0
    %531 = vmatprep.subr.mxu0 0.0
    %532 = vmatpush2.msra.mxu0 0.0
    %533 = vmatprep.subr.mxu0 0.0
    %534 = vmatpush2.msra.mxu0 0.0
    %535 = vmatprep.subr.mxu0 0.0
    %536 = vmatpush2.msra.mxu0 0.0
    %537 = vmatprep.subr.mxu0 0.0
    %538 = vmatpush2.msra.mxu0 0.0
    %539 = vmatprep.subr.mxu0 0.0
    %540 = vmatpush2.msra.mxu0 0.0
    %541 = vmatprep.subr.mxu0 0.0
    %542 = vmatpush2.msra.mxu0 0.0
    %543 = vmatprep.subr.mxu0 0.0
    %544 = vmatpush2.msra.mxu0 0.0
    %545 = vmatprep.subr.mxu0 0.0
    %546 = vmatpush2.msra.mxu0 0.0
    %547 = vmatprep.subr.mxu0 0.0
    %548 = vmatpush2.msra.mxu0 0.0
    %549 = vmatprep.mubr.f32.mxu0 0.0
    %550 = vmatmul.mubr.f32.gmra.mxu0 %v330
    %v551 = vpop.f32.mrf.mxu0
    %v552 = vadd.f32 0.0, %v551
    %v553 = vpop.f32.mrf.mxu0
    %554 = vdwg.mxu0
    %v555 = vadd.f32 %v335, %v552
    %v556 = vxor.u32 %v555, 2147483648
    %v557 = vmul.f32 %v556, 1.442695
    %v558 = vpow.pop %v557
    %v559 = vadd.f32 %v558, 1.0
    %v560 = vrcp.pop %v559
    %v561 = vmul.f32 1.0, %v560
    %v562 = vmul.f32 %v412, %v484
    %v563 = vtanh.pop %v562
    %v564 = vmul.f32 %v561, %v563
    %s565 = scalar_lea.vmem [#allocation8], 8
    %566 = vst [vmem:[%s565] sm:$0xff] %v564
    %s567 = scalar_lea.vmem [#allocation5], 48
    %v568 = vld [vmem:[%s567] sm:$0xff]
    %v569 = vld [vmem:[%s567 + $0x8] sm:$0xff]
    %v570 = vld [vmem:[%s567 + $0x10] sm:$0xff]
    %571 = vmatprep.subr.mxu0 0.0
    %572 = vmatpush1.msra.mxu0 %v63
    %573 = vmatprep.subr.mxu0 0.0
    %574 = vmatpush1.msra.mxu0 %v62
    %575 = vmatprep.subr.mxu0 0.0
    %576 = vmatpush1.msra.mxu0 %v61
    %577 = vmatprep.subr.mxu0 0.0
    %578 = vmatpush1.msra.mxu0 %v60
    %579 = vmatprep.subr.mxu0 0.0
    %580 = vmatpush1.msra.mxu0 %v59
    %581 = vmatprep.subr.mxu0 0.0
    %582 = vmatpush1.msra.mxu0 %v58
    %583 = vmatprep.subr.mxu0 0.0
    %584 = vmatpush1.msra.mxu0 %v57
    %585 = vmatprep.subr.mxu0 0.0
    %586 = vmatpush1.msra.mxu0 %v56
    %587 = vmatprep.subr.mxu0 0.0
    %588 = vmatpush1.msra.mxu0 %v55
    %589 = vmatprep.subr.mxu0 0.0
    %590 = vmatpush1.msra.mxu0 %v54
    %591 = vmatprep.subr.mxu0 0.0
    %592 = vmatpush1.msra.mxu0 %v53
    %593 = vmatprep.subr.mxu0 0.0
    %594 = vmatpush1.msra.mxu0 %v52
    %595 = vmatprep.subr.mxu0 0.0
    %596 = vmatpush1.msra.mxu0 %v51
    %597 = vmatprep.subr.mxu0 0.0
    %598 = vmatpush1.msra.mxu0 %v50
    %599 = vmatprep.subr.mxu0 0.0
    %600 = vmatpush1.msra.mxu0 %v49
    %601 = vmatprep.subr.mxu0 0.0
    %602 = vmatpush1.msra.mxu0 %v48
    %603 = vmatprep.subr.mxu0 0.0
    %604 = vmatpush2.msra.mxu0 0.0
    %605 = vmatprep.subr.mxu0 0.0
    %606 = vmatpush2.msra.mxu0 0.0
    %607 = vmatprep.subr.mxu0 0.0
    %608 = vmatpush2.msra.mxu0 0.0
    %609 = vmatprep.subr.mxu0 0.0
    %610 = vmatpush2.msra.mxu0 0.0
    %611 = vmatprep.subr.mxu0 0.0
    %612 = vmatpush2.msra.mxu0 0.0
    %613 = vmatprep.subr.mxu0 0.0
    %614 = vmatpush2.msra.mxu0 0.0
    %615 = vmatprep.subr.mxu0 0.0
    %616 = vmatpush2.msra.mxu0 0.0
    %617 = vmatprep.subr.mxu0 0.0
    %618 = vmatpush2.msra.mxu0 0.0
    %619 = vmatprep.subr.mxu0 0.0
    %620 = vmatpush2.msra.mxu0 0.0
    %621 = vmatprep.subr.mxu0 0.0
    %622 = vmatpush2.msra.mxu0 0.0
    %623 = vmatprep.subr.mxu0 0.0
    %624 = vmatpush2.msra.mxu0 0.0
    %625 = vmatprep.subr.mxu0 0.0
    %626 = vmatpush2.msra.mxu0 0.0
    %627 = vmatprep.subr.mxu0 0.0
    %628 = vmatpush2.msra.mxu0 0.0
    %629 = vmatprep.subr.mxu0 0.0
    %630 = vmatpush2.msra.mxu0 0.0
    %631 = vmatprep.subr.mxu0 0.0
    %632 = vmatpush2.msra.mxu0 0.0
    %633 = vmatprep.subr.mxu0 0.0
    %634 = vmatpush2.msra.mxu0 0.0
    %635 = vmatprep.mubr.f32.mxu0 0.0
    %636 = vmatmul.mubr.f32.gmra.mxu0 %v564
    %v637 = vpop.f32.mrf.mxu0
    %v638 = vadd.f32 0.0, %v637
    %v639 = vpop.f32.mrf.mxu0
    %640 = vdwg.mxu0
    %v641 = vadd.f32 %v568, %v638
    %v642 = vxor.u32 %v641, 2147483648
    %v643 = vmul.f32 %v642, 1.442695
    %v644 = vpow.pop %v643
    %v645 = vadd.f32 %v644, 1.0
    %v646 = vrcp.pop %v645
    %v647 = vmul.f32 1.0, %v646
    %648 = vmatprep.subr.mxu0 0.0
    %649 = vmatpush1.msra.mxu0 %v80
    %650 = vmatprep.subr.mxu0 0.0
    %651 = vmatpush1.msra.mxu0 %v79
    %652 = vmatprep.subr.mxu0 0.0
    %653 = vmatpush1.msra.mxu0 %v78
    %654 = vmatprep.subr.mxu0 0.0
    %655 = vmatpush1.msra.mxu0 %v77
    %656 = vmatprep.subr.mxu0 0.0
    %657 = vmatpush1.msra.mxu0 %v76
    %658 = vmatprep.subr.mxu0 0.0
    %659 = vmatpush1.msra.mxu0 %v75
    %660 = vmatprep.subr.mxu0 0.0
    %661 = vmatpush1.msra.mxu0 %v74
    %662 = vmatprep.subr.mxu0 0.0
    %663 = vmatpush1.msra.mxu0 %v73
    %664 = vmatprep.subr.mxu0 0.0
    %665 = vmatpush1.msra.mxu0 %v72
    %666 = vmatprep.subr.mxu0 0.0
    %667 = vmatpush1.msra.mxu0 %v71
    %668 = vmatprep.subr.mxu0 0.0
    %669 = vmatpush1.msra.mxu0 %v70
    %670 = vmatprep.subr.mxu0 0.0
    %671 = vmatpush1.msra.mxu0 %v69
    %672 = vmatprep.subr.mxu0 0.0
    %673 = vmatpush1.msra.mxu0 %v68
    %674 = vmatprep.subr.mxu0 0.0
    %675 = vmatpush1.msra.mxu0 %v67
    %676 = vmatprep.subr.mxu0 0.0
    %677 = vmatpush1.msra.mxu0 %v66
    %678 = vmatprep.subr.mxu0 0.0
    %679 = vmatpush1.msra.mxu0 %v65
    %680 = vmatprep.subr.mxu0 0.0
    %681 = vmatpush2.msra.mxu0 0.0
    %682 = vmatprep.subr.mxu0 0.0
    %683 = vmatpush2.msra.mxu0 0.0
    %684 = vmatprep.subr.mxu0 0.0
    %685 = vmatpush2.msra.mxu0 0.0
    %686 = vmatprep.subr.mxu0 0.0
    %687 = vmatpush2.msra.mxu0 0.0
    %688 = vmatprep.subr.mxu0 0.0
    %689 = vmatpush2.msra.mxu0 0.0
    %690 = vmatprep.subr.mxu0 0.0
    %691 = vmatpush2.msra.mxu0 0.0
    %692 = vmatprep.subr.mxu0 0.0
    %693 = vmatpush2.msra.mxu0 0.0
    %694 = vmatprep.subr.mxu0 0.0
    %695 = vmatpush2.msra.mxu0 0.0
    %696 = vmatprep.subr.mxu0 0.0
    %697 = vmatpush2.msra.mxu0 0.0
    %698 = vmatprep.subr.mxu0 0.0
    %699 = vmatpush2.msra.mxu0 0.0
    %700 = vmatprep.subr.mxu0 0.0
    %701 = vmatpush2.msra.mxu0 0.0
    %702 = vmatprep.subr.mxu0 0.0
    %703 = vmatpush2.msra.mxu0 0.0
    %704 = vmatprep.subr.mxu0 0.0
    %705 = vmatpush2.msra.mxu0 0.0
    %706 = vmatprep.subr.mxu0 0.0
    %707 = vmatpush2.msra.mxu0 0.0
    %708 = vmatprep.subr.mxu0 0.0
    %709 = vmatpush2.msra.mxu0 0.0
    %710 = vmatprep.subr.mxu0 0.0
    %711 = vmatpush2.msra.mxu0 0.0
    %712 = vmatprep.mubr.f32.mxu0 0.0
    %713 = vmatmul.mubr.f32.gmra.mxu0 %v564
    %v714 = vpop.f32.mrf.mxu0
    %v715 = vadd.f32 0.0, %v714
    %v716 = vpop.f32.mrf.mxu0
    %717 = vdwg.mxu0
    %v718 = vadd.f32 %v569, %v715
    %v719 = vtanh.pop %v718
    %720 = vmatprep.subr.mxu0 0.0
    %721 = vmatpush1.msra.mxu0 %v97
    %722 = vmatprep.subr.mxu0 0.0
    %723 = vmatpush1.msra.mxu0 %v96
    %724 = vmatprep.subr.mxu0 0.0
    %725 = vmatpush1.msra.mxu0 %v95
    %726 = vmatprep.subr.mxu0 0.0
    %727 = vmatpush1.msra.mxu0 %v94
    %728 = vmatprep.subr.mxu0 0.0
    %729 = vmatpush1.msra.mxu0 %v93
    %730 = vmatprep.subr.mxu0 0.0
    %731 = vmatpush1.msra.mxu0 %v92
    %732 = vmatprep.subr.mxu0 0.0
    %733 = vmatpush1.msra.mxu0 %v91
    %734 = vmatprep.subr.mxu0 0.0
    %735 = vmatpush1.msra.mxu0 %v90
    %736 = vmatprep.subr.mxu0 0.0
    %737 = vmatpush1.msra.mxu0 %v89
    %738 = vmatprep.subr.mxu0 0.0
    %739 = vmatpush1.msra.mxu0 %v88
    %740 = vmatprep.subr.mxu0 0.0
    %741 = vmatpush1.msra.mxu0 %v87
    %742 = vmatprep.subr.mxu0 0.0
    %743 = vmatpush1.msra.mxu0 %v86
    %744 = vmatprep.subr.mxu0 0.0
    %745 = vmatpush1.msra.mxu0 %v85
    %746 = vmatprep.subr.mxu0 0.0
    %747 = vmatpush1.msra.mxu0 %v84
    %748 = vmatprep.subr.mxu0 0.0
    %749 = vmatpush1.msra.mxu0 %v83
    %750 = vmatprep.subr.mxu0 0.0
    %751 = vmatpush1.msra.mxu0 %v82
    %752 = vmatprep.subr.mxu0 0.0
    %753 = vmatpush2.msra.mxu0 0.0
    %754 = vmatprep.subr.mxu0 0.0
    %755 = vmatpush2.msra.mxu0 0.0
    %756 = vmatprep.subr.mxu0 0.0
    %757 = vmatpush2.msra.mxu0 0.0
    %758 = vmatprep.subr.mxu0 0.0
    %759 = vmatpush2.msra.mxu0 0.0
    %760 = vmatprep.subr.mxu0 0.0
    %761 = vmatpush2.msra.mxu0 0.0
    %762 = vmatprep.subr.mxu0 0.0
    %763 = vmatpush2.msra.mxu0 0.0
    %764 = vmatprep.subr.mxu0 0.0
    %765 = vmatpush2.msra.mxu0 0.0
    %766 = vmatprep.subr.mxu0 0.0
    %767 = vmatpush2.msra.mxu0 0.0
    %768 = vmatprep.subr.mxu0 0.0
    %769 = vmatpush2.msra.mxu0 0.0
    %770 = vmatprep.subr.mxu0 0.0
    %771 = vmatpush2.msra.mxu0 0.0
    %772 = vmatprep.subr.mxu0 0.0
    %773 = vmatpush2.msra.mxu0 0.0
    %774 = vmatprep.subr.mxu0 0.0
    %775 = vmatpush2.msra.mxu0 0.0
    %776 = vmatprep.subr.mxu0 0.0
    %777 = vmatpush2.msra.mxu0 0.0
    %778 = vmatprep.subr.mxu0 0.0
    %779 = vmatpush2.msra.mxu0 0.0
    %780 = vmatprep.subr.mxu0 0.0
    %781 = vmatpush2.msra.mxu0 0.0
    %782 = vmatprep.subr.mxu0 0.0
    %783 = vmatpush2.msra.mxu0 0.0
    %784 = vmatprep.mubr.f32.mxu0 0.0
    %785 = vmatmul.mubr.f32.gmra.mxu0 %v564
    %v786 = vpop.f32.mrf.mxu0
    %v787 = vadd.f32 0.0, %v786
    %v788 = vpop.f32.mrf.mxu0
    %789 = vdwg.mxu0
    %v790 = vadd.f32 %v570, %v787
    %v791 = vxor.u32 %v790, 2147483648
    %v792 = vmul.f32 %v791, 1.442695
    %v793 = vpow.pop %v792
    %v794 = vadd.f32 %v793, 1.0
    %v795 = vrcp.pop %v794
    %v796 = vmul.f32 1.0, %v795
    %v797 = vmul.f32 %v647, %v719
    %v798 = vtanh.pop %v797
    %v799 = vmul.f32 %v796, %v798
    %s800 = scalar_lea.vmem [#allocation8], 16
    %801 = vst [vmem:[%s800] sm:$0xff] %v799
    %s802 = scalar_lea.vmem [#allocation5], 72
    %v803 = vld [vmem:[%s802] sm:$0xff]
    %v804 = vld [vmem:[%s802 + $0x8] sm:$0xff]
    %v805 = vld [vmem:[%s802 + $0x10] sm:$0xff]
    %806 = vmatprep.subr.mxu0 0.0
    %807 = vmatpush1.msra.mxu0 %v63
    %808 = vmatprep.subr.mxu0 0.0
    %809 = vmatpush1.msra.mxu0 %v62
    %810 = vmatprep.subr.mxu0 0.0
    %811 = vmatpush1.msra.mxu0 %v61
    %812 = vmatprep.subr.mxu0 0.0
    %813 = vmatpush1.msra.mxu0 %v60
    %814 = vmatprep.subr.mxu0 0.0
    %815 = vmatpush1.msra.mxu0 %v59
    %816 = vmatprep.subr.mxu0 0.0
    %817 = vmatpush1.msra.mxu0 %v58
    %818 = vmatprep.subr.mxu0 0.0
    %819 = vmatpush1.msra.mxu0 %v57
    %820 = vmatprep.subr.mxu0 0.0
    %821 = vmatpush1.msra.mxu0 %v56
    %822 = vmatprep.subr.mxu0 0.0
    %823 = vmatpush1.msra.mxu0 %v55
    %824 = vmatprep.subr.mxu0 0.0
    %825 = vmatpush1.msra.mxu0 %v54
    %826 = vmatprep.subr.mxu0 0.0
    %827 = vmatpush1.msra.mxu0 %v53
    %828 = vmatprep.subr.mxu0 0.0
    %829 = vmatpush1.msra.mxu0 %v52
    %830 = vmatprep.subr.mxu0 0.0
    %831 = vmatpush1.msra.mxu0 %v51
    %832 = vmatprep.subr.mxu0 0.0
    %833 = vmatpush1.msra.mxu0 %v50
    %834 = vmatprep.subr.mxu0 0.0
    %835 = vmatpush1.msra.mxu0 %v49
    %836 = vmatprep.subr.mxu0 0.0
    %837 = vmatpush1.msra.mxu0 %v48
    %838 = vmatprep.subr.mxu0 0.0
    %839 = vmatpush2.msra.mxu0 0.0
    %840 = vmatprep.subr.mxu0 0.0
    %841 = vmatpush2.msra.mxu0 0.0
    %842 = vmatprep.subr.mxu0 0.0
    %843 = vmatpush2.msra.mxu0 0.0
    %844 = vmatprep.subr.mxu0 0.0
    %845 = vmatpush2.msra.mxu0 0.0
    %846 = vmatprep.subr.mxu0 0.0
    %847 = vmatpush2.msra.mxu0 0.0
    %848 = vmatprep.subr.mxu0 0.0
    %849 = vmatpush2.msra.mxu0 0.0
    %850 = vmatprep.subr.mxu0 0.0
    %851 = vmatpush2.msra.mxu0 0.0
    %852 = vmatprep.subr.mxu0 0.0
    %853 = vmatpush2.msra.mxu0 0.0
    %854 = vmatprep.subr.mxu0 0.0
    %855 = vmatpush2.msra.mxu0 0.0
    %856 = vmatprep.subr.mxu0 0.0
    %857 = vmatpush2.msra.mxu0 0.0
    %858 = vmatprep.subr.mxu0 0.0
    %859 = vmatpush2.msra.mxu0 0.0
    %860 = vmatprep.subr.mxu0 0.0
    %861 = vmatpush2.msra.mxu0 0.0
    %862 = vmatprep.subr.mxu0 0.0
    %863 = vmatpush2.msra.mxu0 0.0
    %864 = vmatprep.subr.mxu0 0.0
    %865 = vmatpush2.msra.mxu0 0.0
    %866 = vmatprep.subr.mxu0 0.0
    %867 = vmatpush2.msra.mxu0 0.0
    %868 = vmatprep.subr.mxu0 0.0
    %869 = vmatpush2.msra.mxu0 0.0
    %870 = vmatprep.mubr.f32.mxu0 0.0
    %871 = vmatmul.mubr.f32.gmra.mxu0 %v799
    %v872 = vpop.f32.mrf.mxu0
    %v873 = vadd.f32 0.0, %v872
    %v874 = vpop.f32.mrf.mxu0
    %875 = vdwg.mxu0
    %v876 = vadd.f32 %v803, %v873
    %v877 = vxor.u32 %v876, 2147483648
    %v878 = vmul.f32 %v877, 1.442695
    %v879 = vpow.pop %v878
    %v880 = vadd.f32 %v879, 1.0
    %v881 = vrcp.pop %v880
    %v882 = vmul.f32 1.0, %v881
    %883 = vmatprep.subr.mxu0 0.0
    %884 = vmatpush1.msra.mxu0 %v80
    %885 = vmatprep.subr.mxu0 0.0
    %886 = vmatpush1.msra.mxu0 %v79
    %887 = vmatprep.subr.mxu0 0.0
    %888 = vmatpush1.msra.mxu0 %v78
    %889 = vmatprep.subr.mxu0 0.0
    %890 = vmatpush1.msra.mxu0 %v77
    %891 = vmatprep.subr.mxu0 0.0
    %892 = vmatpush1.msra.mxu0 %v76
    %893 = vmatprep.subr.mxu0 0.0
    %894 = vmatpush1.msra.mxu0 %v75
    %895 = vmatprep.subr.mxu0 0.0
    %896 = vmatpush1.msra.mxu0 %v74
    %897 = vmatprep.subr.mxu0 0.0
    %898 = vmatpush1.msra.mxu0 %v73
    %899 = vmatprep.subr.mxu0 0.0
    %900 = vmatpush1.msra.mxu0 %v72
    %901 = vmatprep.subr.mxu0 0.0
    %902 = vmatpush1.msra.mxu0 %v71
    %903 = vmatprep.subr.mxu0 0.0
    %904 = vmatpush1.msra.mxu0 %v70
    %905 = vmatprep.subr.mxu0 0.0
    %906 = vmatpush1.msra.mxu0 %v69
    %907 = vmatprep.subr.mxu0 0.0
    %908 = vmatpush1.msra.mxu0 %v68
    %909 = vmatprep.subr.mxu0 0.0
    %910 = vmatpush1.msra.mxu0 %v67
    %911 = vmatprep.subr.mxu0 0.0
    %912 = vmatpush1.msra.mxu0 %v66
    %913 = vmatprep.subr.mxu0 0.0
    %914 = vmatpush1.msra.mxu0 %v65
    %915 = vmatprep.subr.mxu0 0.0
    %916 = vmatpush2.msra.mxu0 0.0
    %917 = vmatprep.subr.mxu0 0.0
    %918 = vmatpush2.msra.mxu0 0.0
    %919 = vmatprep.subr.mxu0 0.0
    %920 = vmatpush2.msra.mxu0 0.0
    %921 = vmatprep.subr.mxu0 0.0
    %922 = vmatpush2.msra.mxu0 0.0
    %923 = vmatprep.subr.mxu0 0.0
    %924 = vmatpush2.msra.mxu0 0.0
    %925 = vmatprep.subr.mxu0 0.0
    %926 = vmatpush2.msra.mxu0 0.0
    %927 = vmatprep.subr.mxu0 0.0
    %928 = vmatpush2.msra.mxu0 0.0
    %929 = vmatprep.subr.mxu0 0.0
    %930 = vmatpush2.msra.mxu0 0.0
    %931 = vmatprep.subr.mxu0 0.0
    %932 = vmatpush2.msra.mxu0 0.0
    %933 = vmatprep.subr.mxu0 0.0
    %934 = vmatpush2.msra.mxu0 0.0
    %935 = vmatprep.subr.mxu0 0.0
    %936 = vmatpush2.msra.mxu0 0.0
    %937 = vmatprep.subr.mxu0 0.0
    %938 = vmatpush2.msra.mxu0 0.0
    %939 = vmatprep.subr.mxu0 0.0
    %940 = vmatpush2.msra.mxu0 0.0
    %941 = vmatprep.subr.mxu0 0.0
    %942 = vmatpush2.msra.mxu0 0.0
    %943 = vmatprep.subr.mxu0 0.0
    %944 = vmatpush2.msra.mxu0 0.0
    %945 = vmatprep.subr.mxu0 0.0
    %946 = vmatpush2.msra.mxu0 0.0
    %947 = vmatprep.mubr.f32.mxu0 0.0
    %948 = vmatmul.mubr.f32.gmra.mxu0 %v799
    %v949 = vpop.f32.mrf.mxu0
    %v950 = vadd.f32 0.0, %v949
    %v951 = vpop.f32.mrf.mxu0
    %952 = vdwg.mxu0
    %v953 = vadd.f32 %v804, %v950
    %v954 = vtanh.pop %v953
    %955 = vmatprep.subr.mxu0 0.0
    %956 = vmatpush1.msra.mxu0 %v97
    %957 = vmatprep.subr.mxu0 0.0
    %958 = vmatpush1.msra.mxu0 %v96
    %959 = vmatprep.subr.mxu0 0.0
    %960 = vmatpush1.msra.mxu0 %v95
    %961 = vmatprep.subr.mxu0 0.0
    %962 = vmatpush1.msra.mxu0 %v94
    %963 = vmatprep.subr.mxu0 0.0
    %964 = vmatpush1.msra.mxu0 %v93
    %965 = vmatprep.subr.mxu0 0.0
    %966 = vmatpush1.msra.mxu0 %v92
    %967 = vmatprep.subr.mxu0 0.0
    %968 = vmatpush1.msra.mxu0 %v91
    %969 = vmatprep.subr.mxu0 0.0
    %970 = vmatpush1.msra.mxu0 %v90
    %971 = vmatprep.subr.mxu0 0.0
    %972 = vmatpush1.msra.mxu0 %v89
    %973 = vmatprep.subr.mxu0 0.0
    %974 = vmatpush1.msra.mxu0 %v88
    %975 = vmatprep.subr.mxu0 0.0
    %976 = vmatpush1.msra.mxu0 %v87
    %977 = vmatprep.subr.mxu0 0.0
    %978 = vmatpush1.msra.mxu0 %v86
    %979 = vmatprep.subr.mxu0 0.0
    %980 = vmatpush1.msra.mxu0 %v85
    %981 = vmatprep.subr.mxu0 0.0
    %982 = vmatpush1.msra.mxu0 %v84
    %983 = vmatprep.subr.mxu0 0.0
    %984 = vmatpush1.msra.mxu0 %v83
    %985 = vmatprep.subr.mxu0 0.0
    %986 = vmatpush1.msra.mxu0 %v82
    %987 = vmatprep.subr.mxu0 0.0
    %988 = vmatpush2.msra.mxu0 0.0
    %989 = vmatprep.subr.mxu0 0.0
    %990 = vmatpush2.msra.mxu0 0.0
    %991 = vmatprep.subr.mxu0 0.0
    %992 = vmatpush2.msra.mxu0 0.0
    %993 = vmatprep.subr.mxu0 0.0
    %994 = vmatpush2.msra.mxu0 0.0
    %995 = vmatprep.subr.mxu0 0.0
    %996 = vmatpush2.msra.mxu0 0.0
    %997 = vmatprep.subr.mxu0 0.0
    %998 = vmatpush2.msra.mxu0 0.0
    %999 = vmatprep.subr.mxu0 0.0
    %1000 = vmatpush2.msra.mxu0 0.0
    %1001 = vmatprep.subr.mxu0 0.0
    %1002 = vmatpush2.msra.mxu0 0.0
    %1003 = vmatprep.subr.mxu0 0.0
    %1004 = vmatpush2.msra.mxu0 0.0
    %1005 = vmatprep.subr.mxu0 0.0
    %1006 = vmatpush2.msra.mxu0 0.0
    %1007 = vmatprep.subr.mxu0 0.0
    %1008 = vmatpush2.msra.mxu0 0.0
    %1009 = vmatprep.subr.mxu0 0.0
    %1010 = vmatpush2.msra.mxu0 0.0
    %1011 = vmatprep.subr.mxu0 0.0
    %1012 = vmatpush2.msra.mxu0 0.0
    %1013 = vmatprep.subr.mxu0 0.0
    %1014 = vmatpush2.msra.mxu0 0.0
    %1015 = vmatprep.subr.mxu0 0.0
    %1016 = vmatpush2.msra.mxu0 0.0
    %1017 = vmatprep.subr.mxu0 0.0
    %1018 = vmatpush2.msra.mxu0 0.0
    %1019 = vmatprep.mubr.f32.mxu0 0.0
    %1020 = vmatmul.mubr.f32.gmra.mxu0 %v799
    %v1021 = vpop.f32.mrf.mxu0
    %v1022 = vadd.f32 0.0, %v1021
    %v1023 = vpop.f32.mrf.mxu0
    %1024 = vdwg.mxu0
    %v1025 = vadd.f32 %v805, %v1022
    %v1026 = vxor.u32 %v1025, 2147483648
    %v1027 = vmul.f32 %v1026, 1.442695
    %v1028 = vpow.pop %v1027
    %v1029 = vadd.f32 %v1028, 1.0
    %v1030 = vrcp.pop %v1029
    %v1031 = vmul.f32 1.0, %v1030
    %v1032 = vmul.f32 %v882, %v954
    %v1033 = vtanh.pop %v1032
    %v1034 = vmul.f32 %v1031, %v1033
    %s1035 = scalar_lea.vmem [#allocation8], 24
    %1036 = vst [vmem:[%s1035] sm:$0xff] %v1034
    %s1037 = scalar_lea.vmem [#allocation5], 96
    %v1038 = vld [vmem:[%s1037] sm:$0xff]
    %v1039 = vld [vmem:[%s1037 + $0x8] sm:$0xff]
    %v1040 = vld [vmem:[%s1037 + $0x10] sm:$0xff]
    %1041 = vmatprep.subr.mxu0 0.0
    %1042 = vmatpush1.msra.mxu0 %v63
    %1043 = vmatprep.subr.mxu0 0.0
    %1044 = vmatpush1.msra.mxu0 %v62
    %1045 = vmatprep.subr.mxu0 0.0
    %1046 = vmatpush1.msra.mxu0 %v61
    %1047 = vmatprep.subr.mxu0 0.0
    %1048 = vmatpush1.msra.mxu0 %v60
    %1049 = vmatprep.subr.mxu0 0.0
    %1050 = vmatpush1.msra.mxu0 %v59
    %1051 = vmatprep.subr.mxu0 0.0
    %1052 = vmatpush1.msra.mxu0 %v58
    %1053 = vmatprep.subr.mxu0 0.0
    %1054 = vmatpush1.msra.mxu0 %v57
    %1055 = vmatprep.subr.mxu0 0.0
    %1056 = vmatpush1.msra.mxu0 %v56
    %1057 = vmatprep.subr.mxu0 0.0
    %1058 = vmatpush1.msra.mxu0 %v55
    %1059 = vmatprep.subr.mxu0 0.0
    %1060 = vmatpush1.msra.mxu0 %v54
    %1061 = vmatprep.subr.mxu0 0.0
    %1062 = vmatpush1.msra.mxu0 %v53
    %1063 = vmatprep.subr.mxu0 0.0
    %1064 = vmatpush1.msra.mxu0 %v52
    %1065 = vmatprep.subr.mxu0 0.0
    %1066 = vmatpush1.msra.mxu0 %v51
    %1067 = vmatprep.subr.mxu0 0.0
    %1068 = vmatpush1.msra.mxu0 %v50
    %1069 = vmatprep.subr.mxu0 0.0
    %1070 = vmatpush1.msra.mxu0 %v49
    %1071 = vmatprep.subr.mxu0 0.0
    %1072 = vmatpush1.msra.mxu0 %v48
    %1073 = vmatprep.subr.mxu0 0.0
    %1074 = vmatpush2.msra.mxu0 0.0
    %1075 = vmatprep.subr.mxu0 0.0
    %1076 = vmatpush2.msra.mxu0 0.0
    %1077 = vmatprep.subr.mxu0 0.0
    %1078 = vmatpush2.msra.mxu0 0.0
    %1079 = vmatprep.subr.mxu0 0.0
    %1080 = vmatpush2.msra.mxu0 0.0
    %1081 = vmatprep.subr.mxu0 0.0
    %1082 = vmatpush2.msra.mxu0 0.0
    %1083 = vmatprep.subr.mxu0 0.0
    %1084 = vmatpush2.msra.mxu0 0.0
    %1085 = vmatprep.subr.mxu0 0.0
    %1086 = vmatpush2.msra.mxu0 0.0
    %1087 = vmatprep.subr.mxu0 0.0
    %1088 = vmatpush2.msra.mxu0 0.0
    %1089 = vmatprep.subr.mxu0 0.0
    %1090 = vmatpush2.msra.mxu0 0.0
    %1091 = vmatprep.subr.mxu0 0.0
    %1092 = vmatpush2.msra.mxu0 0.0
    %1093 = vmatprep.subr.mxu0 0.0
    %1094 = vmatpush2.msra.mxu0 0.0
    %1095 = vmatprep.subr.mxu0 0.0
    %1096 = vmatpush2.msra.mxu0 0.0
    %1097 = vmatprep.subr.mxu0 0.0
    %1098 = vmatpush2.msra.mxu0 0.0
    %1099 = vmatprep.subr.mxu0 0.0
    %1100 = vmatpush2.msra.mxu0 0.0
    %1101 = vmatprep.subr.mxu0 0.0
    %1102 = vmatpush2.msra.mxu0 0.0
    %1103 = vmatprep.subr.mxu0 0.0
    %1104 = vmatpush2.msra.mxu0 0.0
    %1105 = vmatprep.mubr.f32.mxu0 0.0
    %1106 = vmatmul.mubr.f32.gmra.mxu0 %v1034
    %v1107 = vpop.f32.mrf.mxu0
    %v1108 = vadd.f32 0.0, %v1107
    %v1109 = vpop.f32.mrf.mxu0
    %1110 = vdwg.mxu0
    %v1111 = vadd.f32 %v1038, %v1108
    %v1112 = vxor.u32 %v1111, 2147483648
    %v1113 = vmul.f32 %v1112, 1.442695
    %v1114 = vpow.pop %v1113
    %v1115 = vadd.f32 %v1114, 1.0
    %v1116 = vrcp.pop %v1115
    %v1117 = vmul.f32 1.0, %v1116
    %1118 = vmatprep.subr.mxu0 0.0
    %1119 = vmatpush1.msra.mxu0 %v80
    %1120 = vmatprep.subr.mxu0 0.0
    %1121 = vmatpush1.msra.mxu0 %v79
    %1122 = vmatprep.subr.mxu0 0.0
    %1123 = vmatpush1.msra.mxu0 %v78
    %1124 = vmatprep.subr.mxu0 0.0
    %1125 = vmatpush1.msra.mxu0 %v77
    %1126 = vmatprep.subr.mxu0 0.0
    %1127 = vmatpush1.msra.mxu0 %v76
    %1128 = vmatprep.subr.mxu0 0.0
    %1129 = vmatpush1.msra.mxu0 %v75
    %1130 = vmatprep.subr.mxu0 0.0
    %1131 = vmatpush1.msra.mxu0 %v74
    %1132 = vmatprep.subr.mxu0 0.0
    %1133 = vmatpush1.msra.mxu0 %v73
    %1134 = vmatprep.subr.mxu0 0.0
    %1135 = vmatpush1.msra.mxu0 %v72
    %1136 = vmatprep.subr.mxu0 0.0
    %1137 = vmatpush1.msra.mxu0 %v71
    %1138 = vmatprep.subr.mxu0 0.0
    %1139 = vmatpush1.msra.mxu0 %v70
    %1140 = vmatprep.subr.mxu0 0.0
    %1141 = vmatpush1.msra.mxu0 %v69
    %1142 = vmatprep.subr.mxu0 0.0
    %1143 = vmatpush1.msra.mxu0 %v68
    %1144 = vmatprep.subr.mxu0 0.0
    %1145 = vmatpush1.msra.mxu0 %v67
    %1146 = vmatprep.subr.mxu0 0.0
    %1147 = vmatpush1.msra.mxu0 %v66
    %1148 = vmatprep.subr.mxu0 0.0
    %1149 = vmatpush1.msra.mxu0 %v65
    %1150 = vmatprep.subr.mxu0 0.0
    %1151 = vmatpush2.msra.mxu0 0.0
    %1152 = vmatprep.subr.mxu0 0.0
    %1153 = vmatpush2.msra.mxu0 0.0
    %1154 = vmatprep.subr.mxu0 0.0
    %1155 = vmatpush2.msra.mxu0 0.0
    %1156 = vmatprep.subr.mxu0 0.0
    %1157 = vmatpush2.msra.mxu0 0.0
    %1158 = vmatprep.subr.mxu0 0.0
    %1159 = vmatpush2.msra.mxu0 0.0
    %1160 = vmatprep.subr.mxu0 0.0
    %1161 = vmatpush2.msra.mxu0 0.0
    %1162 = vmatprep.subr.mxu0 0.0
    %1163 = vmatpush2.msra.mxu0 0.0
    %1164 = vmatprep.subr.mxu0 0.0
    %1165 = vmatpush2.msra.mxu0 0.0
    %1166 = vmatprep.subr.mxu0 0.0
    %1167 = vmatpush2.msra.mxu0 0.0
    %1168 = vmatprep.subr.mxu0 0.0
    %1169 = vmatpush2.msra.mxu0 0.0
    %1170 = vmatprep.subr.mxu0 0.0
    %1171 = vmatpush2.msra.mxu0 0.0
    %1172 = vmatprep.subr.mxu0 0.0
    %1173 = vmatpush2.msra.mxu0 0.0
    %1174 = vmatprep.subr.mxu0 0.0
    %1175 = vmatpush2.msra.mxu0 0.0
    %1176 = vmatprep.subr.mxu0 0.0
    %1177 = vmatpush2.msra.mxu0 0.0
    %1178 = vmatprep.subr.mxu0 0.0
    %1179 = vmatpush2.msra.mxu0 0.0
    %1180 = vmatprep.subr.mxu0 0.0
    %1181 = vmatpush2.msra.mxu0 0.0
    %1182 = vmatprep.mubr.f32.mxu0 0.0
    %1183 = vmatmul.mubr.f32.gmra.mxu0 %v1034
    %v1184 = vpop.f32.mrf.mxu0
    %v1185 = vadd.f32 0.0, %v1184
    %v1186 = vpop.f32.mrf.mxu0
    %1187 = vdwg.mxu0
    %v1188 = vadd.f32 %v1039, %v1185
    %v1189 = vtanh.pop %v1188
    %1190 = vmatprep.subr.mxu0 0.0
    %1191 = vmatpush1.msra.mxu0 %v97
    %1192 = vmatprep.subr.mxu0 0.0
    %1193 = vmatpush1.msra.mxu0 %v96
    %1194 = vmatprep.subr.mxu0 0.0
    %1195 = vmatpush1.msra.mxu0 %v95
    %1196 = vmatprep.subr.mxu0 0.0
    %1197 = vmatpush1.msra.mxu0 %v94
    %1198 = vmatprep.subr.mxu0 0.0
    %1199 = vmatpush1.msra.mxu0 %v93
    %1200 = vmatprep.subr.mxu0 0.0
    %1201 = vmatpush1.msra.mxu0 %v92
    %1202 = vmatprep.subr.mxu0 0.0
    %1203 = vmatpush1.msra.mxu0 %v91
    %1204 = vmatprep.subr.mxu0 0.0
    %1205 = vmatpush1.msra.mxu0 %v90
    %1206 = vmatprep.subr.mxu0 0.0
    %1207 = vmatpush1.msra.mxu0 %v89
    %1208 = vmatprep.subr.mxu0 0.0
    %1209 = vmatpush1.msra.mxu0 %v88
    %1210 = vmatprep.subr.mxu0 0.0
    %1211 = vmatpush1.msra.mxu0 %v87
    %1212 = vmatprep.subr.mxu0 0.0
    %1213 = vmatpush1.msra.mxu0 %v86
    %1214 = vmatprep.subr.mxu0 0.0
    %1215 = vmatpush1.msra.mxu0 %v85
    %1216 = vmatprep.subr.mxu0 0.0
    %1217 = vmatpush1.msra.mxu0 %v84
    %1218 = vmatprep.subr.mxu0 0.0
    %1219 = vmatpush1.msra.mxu0 %v83
    %1220 = vmatprep.subr.mxu0 0.0
    %1221 = vmatpush1.msra.mxu0 %v82
    %1222 = vmatprep.subr.mxu0 0.0
    %1223 = vmatpush2.msra.mxu0 0.0
    %1224 = vmatprep.subr.mxu0 0.0
    %1225 = vmatpush2.msra.mxu0 0.0
    %1226 = vmatprep.subr.mxu0 0.0
    %1227 = vmatpush2.msra.mxu0 0.0
    %1228 = vmatprep.subr.mxu0 0.0
    %1229 = vmatpush2.msra.mxu0 0.0
    %1230 = vmatprep.subr.mxu0 0.0
    %1231 = vmatpush2.msra.mxu0 0.0
    %1232 = vmatprep.subr.mxu0 0.0
    %1233 = vmatpush2.msra.mxu0 0.0
    %1234 = vmatprep.subr.mxu0 0.0
    %1235 = vmatpush2.msra.mxu0 0.0
    %1236 = vmatprep.subr.mxu0 0.0
    %1237 = vmatpush2.msra.mxu0 0.0
    %1238 = vmatprep.subr.mxu0 0.0
    %1239 = vmatpush2.msra.mxu0 0.0
    %1240 = vmatprep.subr.mxu0 0.0
    %1241 = vmatpush2.msra.mxu0 0.0
    %1242 = vmatprep.subr.mxu0 0.0
    %1243 = vmatpush2.msra.mxu0 0.0
    %1244 = vmatprep.subr.mxu0 0.0
    %1245 = vmatpush2.msra.mxu0 0.0
    %1246 = vmatprep.subr.mxu0 0.0
    %1247 = vmatpush2.msra.mxu0 0.0
    %1248 = vmatprep.subr.mxu0 0.0
    %1249 = vmatpush2.msra.mxu0 0.0
    %1250 = vmatprep.subr.mxu0 0.0
    %1251 = vmatpush2.msra.mxu0 0.0
    %1252 = vmatprep.subr.mxu0 0.0
    %1253 = vmatpush2.msra.mxu0 0.0
    %1254 = vmatprep.mubr.f32.mxu0 0.0
    %1255 = vmatmul.mubr.f32.gmra.mxu0 %v1034
    %v1256 = vpop.f32.mrf.mxu0
    %v1257 = vadd.f32 0.0, %v1256
    %v1258 = vpop.f32.mrf.mxu0
    %1259 = vdwg.mxu0
    %v1260 = vadd.f32 %v1040, %v1257
    %v1261 = vxor.u32 %v1260, 2147483648
    %v1262 = vmul.f32 %v1261, 1.442695
    %v1263 = vpow.pop %v1262
    %v1264 = vadd.f32 %v1263, 1.0
    %v1265 = vrcp.pop %v1264
    %v1266 = vmul.f32 1.0, %v1265
    %v1267 = vmul.f32 %v1117, %v1189
    %v1268 = vtanh.pop %v1267
    %v1269 = vmul.f32 %v1266, %v1268
    %s1270 = scalar_lea.vmem [#allocation8], 32
    %1271 = vst [vmem:[%s1270] sm:$0xff] %v1269
    %s1272 = scalar_lea.vmem [#allocation5], 120
    %v1273 = vld [vmem:[%s1272] sm:$0xff]
    %v1274 = vld [vmem:[%s1272 + $0x8] sm:$0xff]
    %v1275 = vld [vmem:[%s1272 + $0x10] sm:$0xff]
    %1276 = vmatprep.subr.mxu0 0.0
    %1277 = vmatpush1.msra.mxu0 %v63
    %1278 = vmatprep.subr.mxu0 0.0
    %1279 = vmatpush1.msra.mxu0 %v62
    %1280 = vmatprep.subr.mxu0 0.0
    %1281 = vmatpush1.msra.mxu0 %v61
    %1282 = vmatprep.subr.mxu0 0.0
    %1283 = vmatpush1.msra.mxu0 %v60
    %1284 = vmatprep.subr.mxu0 0.0
    %1285 = vmatpush1.msra.mxu0 %v59
    %1286 = vmatprep.subr.mxu0 0.0
    %1287 = vmatpush1.msra.mxu0 %v58
    %1288 = vmatprep.subr.mxu0 0.0
    %1289 = vmatpush1.msra.mxu0 %v57
    %1290 = vmatprep.subr.mxu0 0.0
    %1291 = vmatpush1.msra.mxu0 %v56
    %1292 = vmatprep.subr.mxu0 0.0
    %1293 = vmatpush1.msra.mxu0 %v55
    %1294 = vmatprep.subr.mxu0 0.0
    %1295 = vmatpush1.msra.mxu0 %v54
    %1296 = vmatprep.subr.mxu0 0.0
    %1297 = vmatpush1.msra.mxu0 %v53
    %1298 = vmatprep.subr.mxu0 0.0
    %1299 = vmatpush1.msra.mxu0 %v52
    %1300 = vmatprep.subr.mxu0 0.0
    %1301 = vmatpush1.msra.mxu0 %v51
    %1302 = vmatprep.subr.mxu0 0.0
    %1303 = vmatpush1.msra.mxu0 %v50
    %1304 = vmatprep.subr.mxu0 0.0
    %1305 = vmatpush1.msra.mxu0 %v49
    %1306 = vmatprep.subr.mxu0 0.0
    %1307 = vmatpush1.msra.mxu0 %v48
    %1308 = vmatprep.subr.mxu0 0.0
    %1309 = vmatpush2.msra.mxu0 0.0
    %1310 = vmatprep.subr.mxu0 0.0
    %1311 = vmatpush2.msra.mxu0 0.0
    %1312 = vmatprep.subr.mxu0 0.0
    %1313 = vmatpush2.msra.mxu0 0.0
    %1314 = vmatprep.subr.mxu0 0.0
    %1315 = vmatpush2.msra.mxu0 0.0
    %1316 = vmatprep.subr.mxu0 0.0
    %1317 = vmatpush2.msra.mxu0 0.0
    %1318 = vmatprep.subr.mxu0 0.0
    %1319 = vmatpush2.msra.mxu0 0.0
    %1320 = vmatprep.subr.mxu0 0.0
    %1321 = vmatpush2.msra.mxu0 0.0
    %1322 = vmatprep.subr.mxu0 0.0
    %1323 = vmatpush2.msra.mxu0 0.0
    %1324 = vmatprep.subr.mxu0 0.0
    %1325 = vmatpush2.msra.mxu0 0.0
    %1326 = vmatprep.subr.mxu0 0.0
    %1327 = vmatpush2.msra.mxu0 0.0
    %1328 = vmatprep.subr.mxu0 0.0
    %1329 = vmatpush2.msra.mxu0 0.0
    %1330 = vmatprep.subr.mxu0 0.0
    %1331 = vmatpush2.msra.mxu0 0.0
    %1332 = vmatprep.subr.mxu0 0.0
    %1333 = vmatpush2.msra.mxu0 0.0
    %1334 = vmatprep.subr.mxu0 0.0
    %1335 = vmatpush2.msra.mxu0 0.0
    %1336 = vmatprep.subr.mxu0 0.0
    %1337 = vmatpush2.msra.mxu0 0.0
    %1338 = vmatprep.subr.mxu0 0.0
    %1339 = vmatpush2.msra.mxu0 0.0
    %1340 = vmatprep.mubr.f32.mxu0 0.0
    %1341 = vmatmul.mubr.f32.gmra.mxu0 %v1269
    %v1342 = vpop.f32.mrf.mxu0
    %v1343 = vadd.f32 0.0, %v1342
    %v1344 = vpop.f32.mrf.mxu0
    %1345 = vdwg.mxu0
    %v1346 = vadd.f32 %v1273, %v1343
    %v1347 = vxor.u32 %v1346, 2147483648
    %v1348 = vmul.f32 %v1347, 1.442695
    %v1349 = vpow.pop %v1348
    %v1350 = vadd.f32 %v1349, 1.0
    %v1351 = vrcp.pop %v1350
    %v1352 = vmul.f32 1.0, %v1351
    %1353 = vmatprep.subr.mxu0 0.0
    %1354 = vmatpush1.msra.mxu0 %v80
    %1355 = vmatprep.subr.mxu0 0.0
    %1356 = vmatpush1.msra.mxu0 %v79
    %1357 = vmatprep.subr.mxu0 0.0
    %1358 = vmatpush1.msra.mxu0 %v78
    %1359 = vmatprep.subr.mxu0 0.0
    %1360 = vmatpush1.msra.mxu0 %v77
    %1361 = vmatprep.subr.mxu0 0.0
    %1362 = vmatpush1.msra.mxu0 %v76
    %1363 = vmatprep.subr.mxu0 0.0
    %1364 = vmatpush1.msra.mxu0 %v75
    %1365 = vmatprep.subr.mxu0 0.0
    %1366 = vmatpush1.msra.mxu0 %v74
    %1367 = vmatprep.subr.mxu0 0.0
    %1368 = vmatpush1.msra.mxu0 %v73
    %1369 = vmatprep.subr.mxu0 0.0
    %1370 = vmatpush1.msra.mxu0 %v72
    %1371 = vmatprep.subr.mxu0 0.0
    %1372 = vmatpush1.msra.mxu0 %v71
    %1373 = vmatprep.subr.mxu0 0.0
    %1374 = vmatpush1.msra.mxu0 %v70
    %1375 = vmatprep.subr.mxu0 0.0
    %1376 = vmatpush1.msra.mxu0 %v69
    %1377 = vmatprep.subr.mxu0 0.0
    %1378 = vmatpush1.msra.mxu0 %v68
    %1379 = vmatprep.subr.mxu0 0.0
    %1380 = vmatpush1.msra.mxu0 %v67
    %1381 = vmatprep.subr.mxu0 0.0
    %1382 = vmatpush1.msra.mxu0 %v66
    %1383 = vmatprep.subr.mxu0 0.0
    %1384 = vmatpush1.msra.mxu0 %v65
    %1385 = vmatprep.subr.mxu0 0.0
    %1386 = vmatpush2.msra.mxu0 0.0
    %1387 = vmatprep.subr.mxu0 0.0
    %1388 = vmatpush2.msra.mxu0 0.0
    %1389 = vmatprep.subr.mxu0 0.0
    %1390 = vmatpush2.msra.mxu0 0.0
    %1391 = vmatprep.subr.mxu0 0.0
    %1392 = vmatpush2.msra.mxu0 0.0
    %1393 = vmatprep.subr.mxu0 0.0
    %1394 = vmatpush2.msra.mxu0 0.0
    %1395 = vmatprep.subr.mxu0 0.0
    %1396 = vmatpush2.msra.mxu0 0.0
    %1397 = vmatprep.subr.mxu0 0.0
    %1398 = vmatpush2.msra.mxu0 0.0
    %1399 = vmatprep.subr.mxu0 0.0
    %1400 = vmatpush2.msra.mxu0 0.0
    %1401 = vmatprep.subr.mxu0 0.0
    %1402 = vmatpush2.msra.mxu0 0.0
    %1403 = vmatprep.subr.mxu0 0.0
    %1404 = vmatpush2.msra.mxu0 0.0
    %1405 = vmatprep.subr.mxu0 0.0
    %1406 = vmatpush2.msra.mxu0 0.0
    %1407 = vmatprep.subr.mxu0 0.0
    %1408 = vmatpush2.msra.mxu0 0.0
    %1409 = vmatprep.subr.mxu0 0.0
    %1410 = vmatpush2.msra.mxu0 0.0
    %1411 = vmatprep.subr.mxu0 0.0
    %1412 = vmatpush2.msra.mxu0 0.0
    %1413 = vmatprep.subr.mxu0 0.0
    %1414 = vmatpush2.msra.mxu0 0.0
    %1415 = vmatprep.subr.mxu0 0.0
    %1416 = vmatpush2.msra.mxu0 0.0
    %1417 = vmatprep.mubr.f32.mxu0 0.0
    %1418 = vmatmul.mubr.f32.gmra.mxu0 %v1269
    %v1419 = vpop.f32.mrf.mxu0
    %v1420 = vadd.f32 0.0, %v1419
    %v1421 = vpop.f32.mrf.mxu0
    %1422 = vdwg.mxu0
    %v1423 = vadd.f32 %v1274, %v1420
    %v1424 = vtanh.pop %v1423
    %1425 = vmatprep.subr.mxu0 0.0
    %1426 = vmatpush1.msra.mxu0 %v97
    %1427 = vmatprep.subr.mxu0 0.0
    %1428 = vmatpush1.msra.mxu0 %v96
    %1429 = vmatprep.subr.mxu0 0.0
    %1430 = vmatpush1.msra.mxu0 %v95
    %1431 = vmatprep.subr.mxu0 0.0
    %1432 = vmatpush1.msra.mxu0 %v94
    %1433 = vmatprep.subr.mxu0 0.0
    %1434 = vmatpush1.msra.mxu0 %v93
    %1435 = vmatprep.subr.mxu0 0.0
    %1436 = vmatpush1.msra.mxu0 %v92
    %1437 = vmatprep.subr.mxu0 0.0
    %1438 = vmatpush1.msra.mxu0 %v91
    %1439 = vmatprep.subr.mxu0 0.0
    %1440 = vmatpush1.msra.mxu0 %v90
    %1441 = vmatprep.subr.mxu0 0.0
    %1442 = vmatpush1.msra.mxu0 %v89
    %1443 = vmatprep.subr.mxu0 0.0
    %1444 = vmatpush1.msra.mxu0 %v88
    %1445 = vmatprep.subr.mxu0 0.0
    %1446 = vmatpush1.msra.mxu0 %v87
    %1447 = vmatprep.subr.mxu0 0.0
    %1448 = vmatpush1.msra.mxu0 %v86
    %1449 = vmatprep.subr.mxu0 0.0
    %1450 = vmatpush1.msra.mxu0 %v85
    %1451 = vmatprep.subr.mxu0 0.0
    %1452 = vmatpush1.msra.mxu0 %v84
    %1453 = vmatprep.subr.mxu0 0.0
    %1454 = vmatpush1.msra.mxu0 %v83
    %1455 = vmatprep.subr.mxu0 0.0
    %1456 = vmatpush1.msra.mxu0 %v82
    %1457 = vmatprep.subr.mxu0 0.0
    %1458 = vmatpush2.msra.mxu0 0.0
    %1459 = vmatprep.subr.mxu0 0.0
    %1460 = vmatpush2.msra.mxu0 0.0
    %1461 = vmatprep.subr.mxu0 0.0
    %1462 = vmatpush2.msra.mxu0 0.0
    %1463 = vmatprep.subr.mxu0 0.0
    %1464 = vmatpush2.msra.mxu0 0.0
    %1465 = vmatprep.subr.mxu0 0.0
    %1466 = vmatpush2.msra.mxu0 0.0
    %1467 = vmatprep.subr.mxu0 0.0
    %1468 = vmatpush2.msra.mxu0 0.0
    %1469 = vmatprep.subr.mxu0 0.0
    %1470 = vmatpush2.msra.mxu0 0.0
    %1471 = vmatprep.subr.mxu0 0.0
    %1472 = vmatpush2.msra.mxu0 0.0
    %1473 = vmatprep.subr.mxu0 0.0
    %1474 = vmatpush2.msra.mxu0 0.0
    %1475 = vmatprep.subr.mxu0 0.0
    %1476 = vmatpush2.msra.mxu0 0.0
    %1477 = vmatprep.subr.mxu0 0.0
    %1478 = vmatpush2.msra.mxu0 0.0
    %1479 = vmatprep.subr.mxu0 0.0
    %1480 = vmatpush2.msra.mxu0 0.0
    %1481 = vmatprep.subr.mxu0 0.0
    %1482 = vmatpush2.msra.mxu0 0.0
    %1483 = vmatprep.subr.mxu0 0.0
    %1484 = vmatpush2.msra.mxu0 0.0
    %1485 = vmatprep.subr.mxu0 0.0
    %1486 = vmatpush2.msra.mxu0 0.0
    %1487 = vmatprep.subr.mxu0 0.0
    %1488 = vmatpush2.msra.mxu0 0.0
    %1489 = vmatprep.mubr.f32.mxu0 0.0
    %1490 = vmatmul.mubr.f32.gmra.mxu0 %v1269
    %v1491 = vpop.f32.mrf.mxu0
    %v1492 = vadd.f32 0.0, %v1491
    %v1493 = vpop.f32.mrf.mxu0
    %1494 = vdwg.mxu0
    %v1495 = vadd.f32 %v1275, %v1492
    %v1496 = vxor.u32 %v1495, 2147483648
    %v1497 = vmul.f32 %v1496, 1.442695
    %v1498 = vpow.pop %v1497
    %v1499 = vadd.f32 %v1498, 1.0
    %v1500 = vrcp.pop %v1499
    %v1501 = vmul.f32 1.0, %v1500
    %v1502 = vmul.f32 %v1352, %v1424
    %v1503 = vtanh.pop %v1502
    %v1504 = vmul.f32 %v1501, %v1503
    %s1505 = scalar_lea.vmem [#allocation8], 40
    %1506 = vst [vmem:[%s1505] sm:$0xff] %v1504
    %s1507 = scalar_lea.vmem [#allocation5], 144
    %v1508 = vld [vmem:[%s1507] sm:$0xff]
    %v1509 = vld [vmem:[%s1507 + $0x8] sm:$0xff]
    %v1510 = vld [vmem:[%s1507 + $0x10] sm:$0xff]
    %1511 = vmatprep.subr.mxu0 0.0
    %1512 = vmatpush1.msra.mxu0 %v63
    %1513 = vmatprep.subr.mxu0 0.0
    %1514 = vmatpush1.msra.mxu0 %v62
    %1515 = vmatprep.subr.mxu0 0.0
    %1516 = vmatpush1.msra.mxu0 %v61
    %1517 = vmatprep.subr.mxu0 0.0
    %1518 = vmatpush1.msra.mxu0 %v60
    %1519 = vmatprep.subr.mxu0 0.0
    %1520 = vmatpush1.msra.mxu0 %v59
    %1521 = vmatprep.subr.mxu0 0.0
    %1522 = vmatpush1.msra.mxu0 %v58
    %1523 = vmatprep.subr.mxu0 0.0
    %1524 = vmatpush1.msra.mxu0 %v57
    %1525 = vmatprep.subr.mxu0 0.0
    %1526 = vmatpush1.msra.mxu0 %v56
    %1527 = vmatprep.subr.mxu0 0.0
    %1528 = vmatpush1.msra.mxu0 %v55
    %1529 = vmatprep.subr.mxu0 0.0
    %1530 = vmatpush1.msra.mxu0 %v54
    %1531 = vmatprep.subr.mxu0 0.0
    %1532 = vmatpush1.msra.mxu0 %v53
    %1533 = vmatprep.subr.mxu0 0.0
    %1534 = vmatpush1.msra.mxu0 %v52
    %1535 = vmatprep.subr.mxu0 0.0
    %1536 = vmatpush1.msra.mxu0 %v51
    %1537 = vmatprep.subr.mxu0 0.0
    %1538 = vmatpush1.msra.mxu0 %v50
    %1539 = vmatprep.subr.mxu0 0.0
    %1540 = vmatpush1.msra.mxu0 %v49
    %1541 = vmatprep.subr.mxu0 0.0
    %1542 = vmatpush1.msra.mxu0 %v48
    %1543 = vmatprep.subr.mxu0 0.0
    %1544 = vmatpush2.msra.mxu0 0.0
    %1545 = vmatprep.subr.mxu0 0.0
    %1546 = vmatpush2.msra.mxu0 0.0
    %1547 = vmatprep.subr.mxu0 0.0
    %1548 = vmatpush2.msra.mxu0 0.0
    %1549 = vmatprep.subr.mxu0 0.0
    %1550 = vmatpush2.msra.mxu0 0.0
    %1551 = vmatprep.subr.mxu0 0.0
    %1552 = vmatpush2.msra.mxu0 0.0
    %1553 = vmatprep.subr.mxu0 0.0
    %1554 = vmatpush2.msra.mxu0 0.0
    %1555 = vmatprep.subr.mxu0 0.0
    %1556 = vmatpush2.msra.mxu0 0.0
    %1557 = vmatprep.subr.mxu0 0.0
    %1558 = vmatpush2.msra.mxu0 0.0
    %1559 = vmatprep.subr.mxu0 0.0
    %1560 = vmatpush2.msra.mxu0 0.0
    %1561 = vmatprep.subr.mxu0 0.0
    %1562 = vmatpush2.msra.mxu0 0.0
    %1563 = vmatprep.subr.mxu0 0.0
    %1564 = vmatpush2.msra.mxu0 0.0
    %1565 = vmatprep.subr.mxu0 0.0
    %1566 = vmatpush2.msra.mxu0 0.0
    %1567 = vmatprep.subr.mxu0 0.0
    %1568 = vmatpush2.msra.mxu0 0.0
    %1569 = vmatprep.subr.mxu0 0.0
    %1570 = vmatpush2.msra.mxu0 0.0
    %1571 = vmatprep.subr.mxu0 0.0
    %1572 = vmatpush2.msra.mxu0 0.0
    %1573 = vmatprep.subr.mxu0 0.0
    %1574 = vmatpush2.msra.mxu0 0.0
    %1575 = vmatprep.mubr.f32.mxu0 0.0
    %1576 = vmatmul.mubr.f32.gmra.mxu0 %v1504
    %v1577 = vpop.f32.mrf.mxu0
    %v1578 = vadd.f32 0.0, %v1577
    %v1579 = vpop.f32.mrf.mxu0
    %1580 = vdwg.mxu0
    %v1581 = vadd.f32 %v1508, %v1578
    %v1582 = vxor.u32 %v1581, 2147483648
    %v1583 = vmul.f32 %v1582, 1.442695
    %v1584 = vpow.pop %v1583
    %v1585 = vadd.f32 %v1584, 1.0
    %v1586 = vrcp.pop %v1585
    %v1587 = vmul.f32 1.0, %v1586
    %1588 = vmatprep.subr.mxu0 0.0
    %1589 = vmatpush1.msra.mxu0 %v80
    %1590 = vmatprep.subr.mxu0 0.0
    %1591 = vmatpush1.msra.mxu0 %v79
    %1592 = vmatprep.subr.mxu0 0.0
    %1593 = vmatpush1.msra.mxu0 %v78
    %1594 = vmatprep.subr.mxu0 0.0
    %1595 = vmatpush1.msra.mxu0 %v77
    %1596 = vmatprep.subr.mxu0 0.0
    %1597 = vmatpush1.msra.mxu0 %v76
    %1598 = vmatprep.subr.mxu0 0.0
    %1599 = vmatpush1.msra.mxu0 %v75
    %1600 = vmatprep.subr.mxu0 0.0
    %1601 = vmatpush1.msra.mxu0 %v74
    %1602 = vmatprep.subr.mxu0 0.0
    %1603 = vmatpush1.msra.mxu0 %v73
    %1604 = vmatprep.subr.mxu0 0.0
    %1605 = vmatpush1.msra.mxu0 %v72
    %1606 = vmatprep.subr.mxu0 0.0
    %1607 = vmatpush1.msra.mxu0 %v71
    %1608 = vmatprep.subr.mxu0 0.0
    %1609 = vmatpush1.msra.mxu0 %v70
    %1610 = vmatprep.subr.mxu0 0.0
    %1611 = vmatpush1.msra.mxu0 %v69
    %1612 = vmatprep.subr.mxu0 0.0
    %1613 = vmatpush1.msra.mxu0 %v68
    %1614 = vmatprep.subr.mxu0 0.0
    %1615 = vmatpush1.msra.mxu0 %v67
    %1616 = vmatprep.subr.mxu0 0.0
    %1617 = vmatpush1.msra.mxu0 %v66
    %1618 = vmatprep.subr.mxu0 0.0
    %1619 = vmatpush1.msra.mxu0 %v65
    %1620 = vmatprep.subr.mxu0 0.0
    %1621 = vmatpush2.msra.mxu0 0.0
    %1622 = vmatprep.subr.mxu0 0.0
    %1623 = vmatpush2.msra.mxu0 0.0
    %1624 = vmatprep.subr.mxu0 0.0
    %1625 = vmatpush2.msra.mxu0 0.0
    %1626 = vmatprep.subr.mxu0 0.0
    %1627 = vmatpush2.msra.mxu0 0.0
    %1628 = vmatprep.subr.mxu0 0.0
    %1629 = vmatpush2.msra.mxu0 0.0
    %1630 = vmatprep.subr.mxu0 0.0
    %1631 = vmatpush2.msra.mxu0 0.0
    %1632 = vmatprep.subr.mxu0 0.0
    %1633 = vmatpush2.msra.mxu0 0.0
    %1634 = vmatprep.subr.mxu0 0.0
    %1635 = vmatpush2.msra.mxu0 0.0
    %1636 = vmatprep.subr.mxu0 0.0
    %1637 = vmatpush2.msra.mxu0 0.0
    %1638 = vmatprep.subr.mxu0 0.0
    %1639 = vmatpush2.msra.mxu0 0.0
    %1640 = vmatprep.subr.mxu0 0.0
    %1641 = vmatpush2.msra.mxu0 0.0
    %1642 = vmatprep.subr.mxu0 0.0
    %1643 = vmatpush2.msra.mxu0 0.0
    %1644 = vmatprep.subr.mxu0 0.0
    %1645 = vmatpush2.msra.mxu0 0.0
    %1646 = vmatprep.subr.mxu0 0.0
    %1647 = vmatpush2.msra.mxu0 0.0
    %1648 = vmatprep.subr.mxu0 0.0
    %1649 = vmatpush2.msra.mxu0 0.0
    %1650 = vmatprep.subr.mxu0 0.0
    %1651 = vmatpush2.msra.mxu0 0.0
    %1652 = vmatprep.mubr.f32.mxu0 0.0
    %1653 = vmatmul.mubr.f32.gmra.mxu0 %v1504
    %v1654 = vpop.f32.mrf.mxu0
    %v1655 = vadd.f32 0.0, %v1654
    %v1656 = vpop.f32.mrf.mxu0
    %1657 = vdwg.mxu0
    %v1658 = vadd.f32 %v1509, %v1655
    %v1659 = vtanh.pop %v1658
    %1660 = vmatprep.subr.mxu0 0.0
    %1661 = vmatpush1.msra.mxu0 %v97
    %1662 = vmatprep.subr.mxu0 0.0
    %1663 = vmatpush1.msra.mxu0 %v96
    %1664 = vmatprep.subr.mxu0 0.0
    %1665 = vmatpush1.msra.mxu0 %v95
    %1666 = vmatprep.subr.mxu0 0.0
    %1667 = vmatpush1.msra.mxu0 %v94
    %1668 = vmatprep.subr.mxu0 0.0
    %1669 = vmatpush1.msra.mxu0 %v93
    %1670 = vmatprep.subr.mxu0 0.0
    %1671 = vmatpush1.msra.mxu0 %v92
    %1672 = vmatprep.subr.mxu0 0.0
    %1673 = vmatpush1.msra.mxu0 %v91
    %1674 = vmatprep.subr.mxu0 0.0
    %1675 = vmatpush1.msra.mxu0 %v90
    %1676 = vmatprep.subr.mxu0 0.0
    %1677 = vmatpush1.msra.mxu0 %v89
    %1678 = vmatprep.subr.mxu0 0.0
    %1679 = vmatpush1.msra.mxu0 %v88
    %1680 = vmatprep.subr.mxu0 0.0
    %1681 = vmatpush1.msra.mxu0 %v87
    %1682 = vmatprep.subr.mxu0 0.0
    %1683 = vmatpush1.msra.mxu0 %v86
    %1684 = vmatprep.subr.mxu0 0.0
    %1685 = vmatpush1.msra.mxu0 %v85
    %1686 = vmatprep.subr.mxu0 0.0
    %1687 = vmatpush1.msra.mxu0 %v84
    %1688 = vmatprep.subr.mxu0 0.0
    %1689 = vmatpush1.msra.mxu0 %v83
    %1690 = vmatprep.subr.mxu0 0.0
    %1691 = vmatpush1.msra.mxu0 %v82
    %1692 = vmatprep.subr.mxu0 0.0
    %1693 = vmatpush2.msra.mxu0 0.0
    %1694 = vmatprep.subr.mxu0 0.0
    %1695 = vmatpush2.msra.mxu0 0.0
    %1696 = vmatprep.subr.mxu0 0.0
    %1697 = vmatpush2.msra.mxu0 0.0
    %1698 = vmatprep.subr.mxu0 0.0
    %1699 = vmatpush2.msra.mxu0 0.0
    %1700 = vmatprep.subr.mxu0 0.0
    %1701 = vmatpush2.msra.mxu0 0.0
    %1702 = vmatprep.subr.mxu0 0.0
    %1703 = vmatpush2.msra.mxu0 0.0
    %1704 = vmatprep.subr.mxu0 0.0
    %1705 = vmatpush2.msra.mxu0 0.0
    %1706 = vmatprep.subr.mxu0 0.0
    %1707 = vmatpush2.msra.mxu0 0.0
    %1708 = vmatprep.subr.mxu0 0.0
    %1709 = vmatpush2.msra.mxu0 0.0
    %1710 = vmatprep.subr.mxu0 0.0
    %1711 = vmatpush2.msra.mxu0 0.0
    %1712 = vmatprep.subr.mxu0 0.0
    %1713 = vmatpush2.msra.mxu0 0.0
    %1714 = vmatprep.subr.mxu0 0.0
    %1715 = vmatpush2.msra.mxu0 0.0
    %1716 = vmatprep.subr.mxu0 0.0
    %1717 = vmatpush2.msra.mxu0 0.0
    %1718 = vmatprep.subr.mxu0 0.0
    %1719 = vmatpush2.msra.mxu0 0.0
    %1720 = vmatprep.subr.mxu0 0.0
    %1721 = vmatpush2.msra.mxu0 0.0
    %1722 = vmatprep.subr.mxu0 0.0
    %1723 = vmatpush2.msra.mxu0 0.0
    %1724 = vmatprep.mubr.f32.mxu0 0.0
    %1725 = vmatmul.mubr.f32.gmra.mxu0 %v1504
    %v1726 = vpop.f32.mrf.mxu0
    %v1727 = vadd.f32 0.0, %v1726
    %v1728 = vpop.f32.mrf.mxu0
    %1729 = vdwg.mxu0
    %v1730 = vadd.f32 %v1510, %v1727
    %v1731 = vxor.u32 %v1730, 2147483648
    %v1732 = vmul.f32 %v1731, 1.442695
    %v1733 = vpow.pop %v1732
    %v1734 = vadd.f32 %v1733, 1.0
    %v1735 = vrcp.pop %v1734
    %v1736 = vmul.f32 1.0, %v1735
    %v1737 = vmul.f32 %v1587, %v1659
    %v1738 = vtanh.pop %v1737
    %v1739 = vmul.f32 %v1736, %v1738
    %s1740 = scalar_lea.vmem [#allocation8], 48
    %1741 = vst [vmem:[%s1740] sm:$0xff] %v1739
    %s1742 = scalar_lea.vmem [#allocation5], 168
    %v1743 = vld [vmem:[%s1742] sm:$0xff]
    %v1744 = vld [vmem:[%s1742 + $0x8] sm:$0xff]
    %v1745 = vld [vmem:[%s1742 + $0x10] sm:$0xff]
    %1746 = vmatprep.subr.mxu0 0.0
    %1747 = vmatpush1.msra.mxu0 %v63
    %1748 = vmatprep.subr.mxu0 0.0
    %1749 = vmatpush1.msra.mxu0 %v62
    %1750 = vmatprep.subr.mxu0 0.0
    %1751 = vmatpush1.msra.mxu0 %v61
    %1752 = vmatprep.subr.mxu0 0.0
    %1753 = vmatpush1.msra.mxu0 %v60
    %1754 = vmatprep.subr.mxu0 0.0
    %1755 = vmatpush1.msra.mxu0 %v59
    %1756 = vmatprep.subr.mxu0 0.0
    %1757 = vmatpush1.msra.mxu0 %v58
    %1758 = vmatprep.subr.mxu0 0.0
    %1759 = vmatpush1.msra.mxu0 %v57
    %1760 = vmatprep.subr.mxu0 0.0
    %1761 = vmatpush1.msra.mxu0 %v56
    %1762 = vmatprep.subr.mxu0 0.0
    %1763 = vmatpush1.msra.mxu0 %v55
    %1764 = vmatprep.subr.mxu0 0.0
    %1765 = vmatpush1.msra.mxu0 %v54
    %1766 = vmatprep.subr.mxu0 0.0
    %1767 = vmatpush1.msra.mxu0 %v53
    %1768 = vmatprep.subr.mxu0 0.0
    %1769 = vmatpush1.msra.mxu0 %v52
    %1770 = vmatprep.subr.mxu0 0.0
    %1771 = vmatpush1.msra.mxu0 %v51
    %1772 = vmatprep.subr.mxu0 0.0
    %1773 = vmatpush1.msra.mxu0 %v50
    %1774 = vmatprep.subr.mxu0 0.0
    %1775 = vmatpush1.msra.mxu0 %v49
    %1776 = vmatprep.subr.mxu0 0.0
    %1777 = vmatpush1.msra.mxu0 %v48
    %1778 = vmatprep.subr.mxu0 0.0
    %1779 = vmatpush2.msra.mxu0 0.0
    %1780 = vmatprep.subr.mxu0 0.0
    %1781 = vmatpush2.msra.mxu0 0.0
    %1782 = vmatprep.subr.mxu0 0.0
    %1783 = vmatpush2.msra.mxu0 0.0
    %1784 = vmatprep.subr.mxu0 0.0
    %1785 = vmatpush2.msra.mxu0 0.0
    %1786 = vmatprep.subr.mxu0 0.0
    %1787 = vmatpush2.msra.mxu0 0.0
    %1788 = vmatprep.subr.mxu0 0.0
    %1789 = vmatpush2.msra.mxu0 0.0
    %1790 = vmatprep.subr.mxu0 0.0
    %1791 = vmatpush2.msra.mxu0 0.0
    %1792 = vmatprep.subr.mxu0 0.0
    %1793 = vmatpush2.msra.mxu0 0.0
    %1794 = vmatprep.subr.mxu0 0.0
    %1795 = vmatpush2.msra.mxu0 0.0
    %1796 = vmatprep.subr.mxu0 0.0
    %1797 = vmatpush2.msra.mxu0 0.0
    %1798 = vmatprep.subr.mxu0 0.0
    %1799 = vmatpush2.msra.mxu0 0.0
    %1800 = vmatprep.subr.mxu0 0.0
    %1801 = vmatpush2.msra.mxu0 0.0
    %1802 = vmatprep.subr.mxu0 0.0
    %1803 = vmatpush2.msra.mxu0 0.0
    %1804 = vmatprep.subr.mxu0 0.0
    %1805 = vmatpush2.msra.mxu0 0.0
    %1806 = vmatprep.subr.mxu0 0.0
    %1807 = vmatpush2.msra.mxu0 0.0
    %1808 = vmatprep.subr.mxu0 0.0
    %1809 = vmatpush2.msra.mxu0 0.0
    %1810 = vmatprep.mubr.f32.mxu0 0.0
    %1811 = vmatmul.mubr.f32.gmra.mxu0 %v1739
    %v1812 = vpop.f32.mrf.mxu0
    %v1813 = vadd.f32 0.0, %v1812
    %v1814 = vpop.f32.mrf.mxu0
    %1815 = vdwg.mxu0
    %v1816 = vadd.f32 %v1743, %v1813
    %v1817 = vxor.u32 %v1816, 2147483648
    %v1818 = vmul.f32 %v1817, 1.442695
    %v1819 = vpow.pop %v1818
    %v1820 = vadd.f32 %v1819, 1.0
    %v1821 = vrcp.pop %v1820
    %v1822 = vmul.f32 1.0, %v1821
    %1823 = vmatprep.subr.mxu0 0.0
    %1824 = vmatpush1.msra.mxu0 %v80
    %1825 = vmatprep.subr.mxu0 0.0
    %1826 = vmatpush1.msra.mxu0 %v79
    %1827 = vmatprep.subr.mxu0 0.0
    %1828 = vmatpush1.msra.mxu0 %v78
    %1829 = vmatprep.subr.mxu0 0.0
    %1830 = vmatpush1.msra.mxu0 %v77
    %1831 = vmatprep.subr.mxu0 0.0
    %1832 = vmatpush1.msra.mxu0 %v76
    %1833 = vmatprep.subr.mxu0 0.0
    %1834 = vmatpush1.msra.mxu0 %v75
    %1835 = vmatprep.subr.mxu0 0.0
    %1836 = vmatpush1.msra.mxu0 %v74
    %1837 = vmatprep.subr.mxu0 0.0
    %1838 = vmatpush1.msra.mxu0 %v73
    %1839 = vmatprep.subr.mxu0 0.0
    %1840 = vmatpush1.msra.mxu0 %v72
    %1841 = vmatprep.subr.mxu0 0.0
    %1842 = vmatpush1.msra.mxu0 %v71
    %1843 = vmatprep.subr.mxu0 0.0
    %1844 = vmatpush1.msra.mxu0 %v70
    %1845 = vmatprep.subr.mxu0 0.0
    %1846 = vmatpush1.msra.mxu0 %v69
    %1847 = vmatprep.subr.mxu0 0.0
    %1848 = vmatpush1.msra.mxu0 %v68
    %1849 = vmatprep.subr.mxu0 0.0
    %1850 = vmatpush1.msra.mxu0 %v67
    %1851 = vmatprep.subr.mxu0 0.0
    %1852 = vmatpush1.msra.mxu0 %v66
    %1853 = vmatprep.subr.mxu0 0.0
    %1854 = vmatpush1.msra.mxu0 %v65
    %1855 = vmatprep.subr.mxu0 0.0
    %1856 = vmatpush2.msra.mxu0 0.0
    %1857 = vmatprep.subr.mxu0 0.0
    %1858 = vmatpush2.msra.mxu0 0.0
    %1859 = vmatprep.subr.mxu0 0.0
    %1860 = vmatpush2.msra.mxu0 0.0
    %1861 = vmatprep.subr.mxu0 0.0
    %1862 = vmatpush2.msra.mxu0 0.0
    %1863 = vmatprep.subr.mxu0 0.0
    %1864 = vmatpush2.msra.mxu0 0.0
    %1865 = vmatprep.subr.mxu0 0.0
    %1866 = vmatpush2.msra.mxu0 0.0
    %1867 = vmatprep.subr.mxu0 0.0
    %1868 = vmatpush2.msra.mxu0 0.0
    %1869 = vmatprep.subr.mxu0 0.0
    %1870 = vmatpush2.msra.mxu0 0.0
    %1871 = vmatprep.subr.mxu0 0.0
    %1872 = vmatpush2.msra.mxu0 0.0
    %1873 = vmatprep.subr.mxu0 0.0
    %1874 = vmatpush2.msra.mxu0 0.0
    %1875 = vmatprep.subr.mxu0 0.0
    %1876 = vmatpush2.msra.mxu0 0.0
    %1877 = vmatprep.subr.mxu0 0.0
    %1878 = vmatpush2.msra.mxu0 0.0
    %1879 = vmatprep.subr.mxu0 0.0
    %1880 = vmatpush2.msra.mxu0 0.0
    %1881 = vmatprep.subr.mxu0 0.0
    %1882 = vmatpush2.msra.mxu0 0.0
    %1883 = vmatprep.subr.mxu0 0.0
    %1884 = vmatpush2.msra.mxu0 0.0
    %1885 = vmatprep.subr.mxu0 0.0
    %1886 = vmatpush2.msra.mxu0 0.0
    %1887 = vmatprep.mubr.f32.mxu0 0.0
    %1888 = vmatmul.mubr.f32.gmra.mxu0 %v1739
    %v1889 = vpop.f32.mrf.mxu0
    %v1890 = vadd.f32 0.0, %v1889
    %v1891 = vpop.f32.mrf.mxu0
    %1892 = vdwg.mxu0
    %v1893 = vadd.f32 %v1744, %v1890
    %v1894 = vtanh.pop %v1893
    %1895 = vmatprep.subr.mxu0 0.0
    %1896 = vmatpush1.msra.mxu0 %v97
    %1897 = vmatprep.subr.mxu0 0.0
    %1898 = vmatpush1.msra.mxu0 %v96
    %1899 = vmatprep.subr.mxu0 0.0
    %1900 = vmatpush1.msra.mxu0 %v95
    %1901 = vmatprep.subr.mxu0 0.0
    %1902 = vmatpush1.msra.mxu0 %v94
    %1903 = vmatprep.subr.mxu0 0.0
    %1904 = vmatpush1.msra.mxu0 %v93
    %1905 = vmatprep.subr.mxu0 0.0
    %1906 = vmatpush1.msra.mxu0 %v92
    %1907 = vmatprep.subr.mxu0 0.0
    %1908 = vmatpush1.msra.mxu0 %v91
    %1909 = vmatprep.subr.mxu0 0.0
    %1910 = vmatpush1.msra.mxu0 %v90
    %1911 = vmatprep.subr.mxu0 0.0
    %1912 = vmatpush1.msra.mxu0 %v89
    %1913 = vmatprep.subr.mxu0 0.0
    %1914 = vmatpush1.msra.mxu0 %v88
    %1915 = vmatprep.subr.mxu0 0.0
    %1916 = vmatpush1.msra.mxu0 %v87
    %1917 = vmatprep.subr.mxu0 0.0
    %1918 = vmatpush1.msra.mxu0 %v86
    %1919 = vmatprep.subr.mxu0 0.0
    %1920 = vmatpush1.msra.mxu0 %v85
    %1921 = vmatprep.subr.mxu0 0.0
    %1922 = vmatpush1.msra.mxu0 %v84
    %1923 = vmatprep.subr.mxu0 0.0
    %1924 = vmatpush1.msra.mxu0 %v83
    %1925 = vmatprep.subr.mxu0 0.0
    %1926 = vmatpush1.msra.mxu0 %v82
    %1927 = vmatprep.subr.mxu0 0.0
    %1928 = vmatpush2.msra.mxu0 0.0
    %1929 = vmatprep.subr.mxu0 0.0
    %1930 = vmatpush2.msra.mxu0 0.0
    %1931 = vmatprep.subr.mxu0 0.0
    %1932 = vmatpush2.msra.mxu0 0.0
    %1933 = vmatprep.subr.mxu0 0.0
    %1934 = vmatpush2.msra.mxu0 0.0
    %1935 = vmatprep.subr.mxu0 0.0
    %1936 = vmatpush2.msra.mxu0 0.0
    %1937 = vmatprep.subr.mxu0 0.0
    %1938 = vmatpush2.msra.mxu0 0.0
    %1939 = vmatprep.subr.mxu0 0.0
    %1940 = vmatpush2.msra.mxu0 0.0
    %1941 = vmatprep.subr.mxu0 0.0
    %1942 = vmatpush2.msra.mxu0 0.0
    %1943 = vmatprep.subr.mxu0 0.0
    %1944 = vmatpush2.msra.mxu0 0.0
    %1945 = vmatprep.subr.mxu0 0.0
    %1946 = vmatpush2.msra.mxu0 0.0
    %1947 = vmatprep.subr.mxu0 0.0
    %1948 = vmatpush2.msra.mxu0 0.0
    %1949 = vmatprep.subr.mxu0 0.0
    %1950 = vmatpush2.msra.mxu0 0.0
    %1951 = vmatprep.subr.mxu0 0.0
    %1952 = vmatpush2.msra.mxu0 0.0
    %1953 = vmatprep.subr.mxu0 0.0
    %1954 = vmatpush2.msra.mxu0 0.0
    %1955 = vmatprep.subr.mxu0 0.0
    %1956 = vmatpush2.msra.mxu0 0.0
    %1957 = vmatprep.subr.mxu0 0.0
    %1958 = vmatpush2.msra.mxu0 0.0
    %1959 = vmatprep.mubr.f32.mxu0 0.0
    %1960 = vmatmul.mubr.f32.gmra.mxu0 %v1739
    %v1961 = vpop.f32.mrf.mxu0
    %v1962 = vadd.f32 0.0, %v1961
    %v1963 = vpop.f32.mrf.mxu0
    %1964 = vdwg.mxu0
    %v1965 = vadd.f32 %v1745, %v1962
    %v1966 = vxor.u32 %v1965, 2147483648
    %v1967 = vmul.f32 %v1966, 1.442695
    %v1968 = vpow.pop %v1967
    %v1969 = vadd.f32 %v1968, 1.0
    %v1970 = vrcp.pop %v1969
    %v1971 = vmul.f32 1.0, %v1970
    %v1972 = vmul.f32 %v1822, %v1894
    %v1973 = vtanh.pop %v1972
    %v1974 = vmul.f32 %v1971, %v1973
    %s1975 = scalar_lea.vmem [#allocation8], 56
    %1976 = vst [vmem:[%s1975] sm:$0xff] %v1974
    %1977 = vst [vmem:[#allocation3] sm:$0xff] %v1974
    // Predicated region
    $region18: #{tpu_custom_call.1} parent=1 // pred_check
      %p1978 = pneg %p28
    $region19: #{tpu_custom_call.1} parent=1 // pred_check_branch
      %1980 = sbr.rel (%p1978) target = $region21
    $region20: #{tpu_custom_call.1} parent=1 // pred_region
      %1981 = vst [vmem:[#allocation9] sm:$0xff] %v1972
      %1982 = vst [vmem:[#allocation11] sm:$0xff] %v1974
    $region21: #{tpu_custom_call.1} parent=1 // pred_fallthru
      _
    // Predicated region
    $region22: #{tpu_custom_call.1} parent=1 // pred_check
      _
    $region23: #{tpu_custom_call.1} parent=1 // pred_check_branch
      %1984 = sbr.rel (0) target = $region25
    $region24: #{tpu_custom_call.1} parent=1 // pred_region
      %s1986 = ssub.s32 1024, 1024
      %1987 = vsyncadd [#allocation7], %s1986
      %s1988 = sshll.u32 [#allocation8], 4
      %s1989 = int_to_ptr.vmem [resolvable:$true] %s1988
      %1994 = dma.vmem_to_hbm [thread:$0]  %s1989, 1024, %s2, [#allocation7], 128, 128, 8
    $region25: #{tpu_custom_call.1} parent=1 // pred_fallthru
      _
    // Predicated region
    $region26: #{tpu_custom_call.1} parent=1 // pred_check
      _
    $region27: #{tpu_custom_call.1} parent=1 // pred_check_branch
      %1996 = sbr.rel (0) target = $region29
    $region28: #{tpu_custom_call.1} parent=1 // pred_region
      %s1998 = ssub.s32 128, 128
      %1999 = vsyncadd [#allocation10], %s1998
      %s2001 = sshll.u32 [#allocation9], 4
      %s2002 = int_to_ptr.vmem [resolvable:$true] %s2001
      %2004 = dma.vmem_to_hbm [thread:$0]  %s2002, 128, %s3, [#allocation10]
    $region29: #{tpu_custom_call.1} parent=1 // pred_fallthru
      _
    // Predicated region
    $region30: #{tpu_custom_call.1} parent=1 // pred_check
      _
    $region31: #{tpu_custom_call.1} parent=1 // pred_check_branch
      %2006 = sbr.rel (0) target = $region33
    $region32: #{tpu_custom_call.1} parent=1 // pred_region
      %s2008 = ssub.s32 128, 128
      %2009 = vsyncadd [#allocation10], %s2008
      %s2011 = sshll.u32 [#allocation11], 4
      %s2012 = int_to_ptr.vmem [resolvable:$true] %s2011
      %2014 = dma.vmem_to_hbm [thread:$0]  %s2012, 128, %s4, [#allocation10]
    $region33: #{tpu_custom_call.1} parent=1 // pred_fallthru
      _
    // Predicated region
    $region34: #{tpu_custom_call.1} parent=1 // pred_check
      _
    $region35: #{tpu_custom_call.1} parent=1 // pred_check_branch
      %2016 = sbr.rel (0) target = $region37
    $region36: #{tpu_custom_call.1} parent=1 // pred_region
      %2017 = dma.done [#allocation7], 1024
    $region37: #{tpu_custom_call.1} parent=1 // pred_fallthru
      _
    // Predicated region
    $region38: #{tpu_custom_call.1} parent=1 // pred_check
      _
    $region39: #{tpu_custom_call.1} parent=1 // pred_check_branch
      %2019 = sbr.rel (0) target = $region41
    $region40: #{tpu_custom_call.1} parent=1 // pred_region
      %2020 = dma.done [#allocation10], 128
    $region41: #{tpu_custom_call.1} parent=1 // pred_fallthru
      _
    // Predicated region
    $region42: #{tpu_custom_call.1} parent=1 // pred_check
      _
    $region43: #{tpu_custom_call.1} parent=1 // pred_check_branch
      %2022 = sbr.rel (0) target = $region45
    $region44: #{tpu_custom_call.1} parent=1 // pred_region
      %2023 = dma.done [#allocation10], 128
    $region45: #{tpu_custom_call.1} parent=1 // pred_fallthru
      _
    %2024 = vsyncpa [#allocation6], 1
    %2025 = vsyncpa [#allocation7], 1
    %2026 = vsyncpa [#allocation10], 1
  %2027 = vsyncmov [#allocation4]
  %s2028 = vpop.sfrf %2027
  %p2029 = scmp.eq.s32.totalorder %s2028, 0
  %p2030 = pneg %p2029
  %2032 = shalt.err (%p2030)

</llo_original>
